<compile_context>
chip_gen: v7x
topology: tpu7x:2x2x1
jax: 0.10.0
libtpu: 0.0.40
codegen_flags: <defaults>
</compile_context>

<pallas_src>
import jax
import jax.numpy as jnp
from jax.experimental import pallas as pl
from jax.experimental.pallas import tpu as pltpu


def _round_up_128(n):
    return ((n + 127) // 128) * 128


def _make_kernel(T, B, GP, unrolled):
    """Build the GRU+Linear kernel for static (T, B, gate-pad GP)."""

    def _sigmoid(v):
        # One EUP tanh per gate instead of exp + reciprocal.
        return 0.5 * jnp.tanh(0.5 * v) + 0.5

    def kernel(x_ref, wi_ref, bi_ref, wh_ref, bhn_ref, wl_ref, bl_ref,
               out_ref, *scratch):
        # x_ref:  (T*B, C)    time-major inputs, row t*B + b
        # wi_ref: (C, 3*GP)   gate-padded input->hidden weights [r|pad|z|pad|n|pad]
        # bi_ref: (1, 3*GP)   [b_ir+b_hr, b_iz+b_hz, b_in] (gate-padded)
        # wh_ref: (GP, 3*GP)  gate-/row-padded hidden->hidden weights, bf16
        # bhn_ref:(1, GP)     b_hn (padded) -- must stay inside r * (.)
        # wl_ref: (GP, O)     final linear weight (row-padded)
        # bl_ref: (1, O)      final linear bias
        # out_ref:(B, O)
        # scratch: optional VMEM (T*B, 3*GP) for the rolled long-T fallback.

        # (1) Hoisted input projection for ALL time steps: one dense matmul,
        #     r/z biases already folded in. Held in registers when unrolled.
        gi_all = (jnp.dot(x_ref[...], wi_ref[...],
                          preferred_element_type=jnp.float32) + bi_ref[...])

        wh = wh_ref[...]                                    # (GP, 3GP) bf16
        bhn = jnp.broadcast_to(bhn_ref[...], (B, GP))       # hoisted broadcast

        def step(gi_t, h):
            # Serial critical path per step: cast -> MXU matmul -> adds -> EUP.
            gh = jnp.dot(h.astype(jnp.bfloat16), wh,
                         preferred_element_type=jnp.float32)    # (B, 3GP) f32
            r = _sigmoid(gi_t[:, 0:GP] + gh[:, 0:GP])
            z = _sigmoid(gi_t[:, GP:2 * GP] + gh[:, GP:2 * GP])
            n = jnp.tanh(gi_t[:, 2 * GP:] + r * (gh[:, 2 * GP:] + bhn))
            return n + z * (h - n)

        h = jnp.zeros((B, GP), jnp.float32)
        if unrolled:
            # Fully unrolled: static slices (off the h-chain), full scheduler
            # visibility; gi_all never touches VMEM scratch.
            for t in range(T):
                h = step(gi_all[t * B:(t + 1) * B, :], h)
        else:
            # Long-T fallback: park the projection in VMEM scratch and run a
            # partially unrolled rolled loop over it.
            gi_ref, = scratch
            gi_ref[...] = gi_all

            def body(t, hc):
                return step(gi_ref[pl.ds(t * B, B), :], hc)

            h = jax.lax.fori_loop(0, T, body, h, unroll=4)

        # (2) Dropout(p=0.01) is identity at inference; apply the final Linear.
        out_ref[...] = (jnp.dot(h, wl_ref[...],
                                preferred_element_type=jnp.float32)
                        + bl_ref[...])

    return kernel


def create_forward(x, params):
    """x: (B, C, T) float32, mirrors the PyTorch NCT input. Returns (B, O)."""
    B, C, T = x.shape
    GP = params["wh"].shape[0]          # gate pad = round_up(H, 128)
    O = params["wl"].shape[1]

    # (B, C, T) -> (B, T, C) -> time-major (T, B, C) -> flat (T*B, C).
    # Kept in the jitted wrapper (single tiny fusion feeding the kernel).
    x_tm = jnp.transpose(x, (2, 0, 1)).astype(jnp.float32).reshape(T * B, C)

    unrolled = (T <= 32 and T * B <= 64)
    scratch = [] if unrolled else [pltpu.VMEM((T * B, 3 * GP), jnp.float32)]

    # VMEM-resident budget guard: everything below is simultaneously resident.
    resident = (x_tm.size * 4 + params["wi"].size * 4 + params["bi"].size * 4
                + params["wh"].size * 2 + params["bhn"].size * 4
                + params["wl"].size * 4 + params["bl"].size * 4
                + (0 if unrolled else T * B * 3 * GP * 4))
    # TODO(synk): if this ever trips (very long T), chunk the hoisted input
    # projection over T (emit_pipeline / T grid axis) instead of failing.
    assert resident < 24 * 1024 * 1024, "GRU kernel would overflow VMEM"

    vmem = pl.BlockSpec(memory_space=pltpu.MemorySpace.VMEM)
    return pl.pallas_call(
        _make_kernel(T, B, GP, unrolled),
        out_shape=jax.ShapeDtypeStruct((B, O), jnp.float32),
        in_specs=[vmem] * 7,
        out_specs=vmem,
        scratch_shapes=scratch,
    )(x_tm, params["wi"], params["bi"], params["wh"], params["bhn"],
      params["wl"], params["bl"])


def init_raw_params(key, input_size, hidden_units, output_size):
    """PyTorch-layout parameters, uniform(-1/sqrt(H), 1/sqrt(H)) like nn.GRU."""
    H, I, O = hidden_units, input_size, output_size
    k = jax.random.split(key, 6)
    bound = 1.0 / jnp.sqrt(jnp.float32(H))
    return {
        "w_ih": jax.random.uniform(k[0], (3 * H, I), jnp.float32, -bound, bound),
        "w_hh": jax.random.uniform(k[1], (3 * H, H), jnp.float32, -bound, bound),
        "b_ih": jax.random.uniform(k[2], (3 * H,), jnp.float32, -bound, bound),
        "b_hh": jax.random.uniform(k[3], (3 * H,), jnp.float32, -bound, bound),
        "w_lin": jax.random.uniform(k[4], (O, H), jnp.float32, -bound, bound),
        "b_lin": jax.random.uniform(k[5], (O,), jnp.float32, -bound, bound),
    }


def pack_params(raw):
    """Fuse gates, lane-pad each gate to 128 lanes, and pre-fold biases."""
    w_ih, w_hh = raw["w_ih"], raw["w_hh"]
    b_ih, b_hh = raw["b_ih"], raw["b_hh"]
    H = w_hh.shape[1]
    C = w_ih.shape[1]
    O = raw["w_lin"].shape[0]
    GP = _round_up_128(H)

    wi = jnp.zeros((C, 3 * GP), jnp.float32)
    wh = jnp.zeros((GP, 3 * GP), jnp.float32)
    bi = jnp.zeros((1, 3 * GP), jnp.float32)
    for g in range(3):                                  # gate order r, z, n
        wi = wi.at[:, g * GP:g * GP + H].set(w_ih[g * H:(g + 1) * H, :].T)
        wh = wh.at[:H, g * GP:g * GP + H].set(w_hh[g * H:(g + 1) * H, :].T)
    # r/z biases (input + hidden) folded into the hoisted input projection;
    # b_in goes there too; b_hn must stay inside r * (.) so it is kept apart.
    bi = bi.at[0, 0:H].set(b_ih[0:H] + b_hh[0:H])
    bi = bi.at[0, GP:GP + H].set(b_ih[H:2 * H] + b_hh[H:2 * H])
    bi = bi.at[0, 2 * GP:2 * GP + H].set(b_ih[2 * H:3 * H])
    bhn = jnp.zeros((1, GP), jnp.float32).at[0, :H].set(b_hh[2 * H:3 * H])

    wl = jnp.zeros((GP, O), jnp.float32).at[:H, :].set(raw["w_lin"].T)
    bl = raw["b_lin"].reshape(1, O)

    return {
        "wi": wi, "bi": bi,
        "wh": wh.astype(jnp.bfloat16),   # MXU operand only; gate math stays f32
        "bhn": bhn, "wl": wl, "bl": bl,
    }


def reference_forward(x, raw):
    """Pure-JAX f32 reference using the raw (un-fused) PyTorch GRU equations."""
    B, C, T = x.shape
    H = raw["w_hh"].shape[1]
    x_tm = jnp.transpose(x, (2, 0, 1)).astype(jnp.float32)     # (T, B, C)

    w_ih, w_hh, b_ih, b_hh = raw["w_ih"], raw["w_hh"], raw["b_ih"], raw["b_hh"]
    W_ir, W_iz, W_in = w_ih[:H], w_ih[H:2 * H], w_ih[2 * H:]
    W_hr, W_hz, W_hn = w_hh[:H], w_hh[H:2 * H], w_hh[2 * H:]
    b_ir, b_iz, b_in = b_ih[:H], b_ih[H:2 * H], b_ih[2 * H:]
    b_hr, b_hz, b_hn = b_hh[:H], b_hh[H:2 * H], b_hh[2 * H:]

    def step(h, x_t):
        r = jax.nn.sigmoid(x_t @ W_ir.T + b_ir + h @ W_hr.T + b_hr)
        z = jax.nn.sigmoid(x_t @ W_iz.T + b_iz + h @ W_hz.T + b_hz)
        n = jnp.tanh(x_t @ W_in.T + b_in + r * (h @ W_hn.T + b_hn))
        return (1.0 - z) * n + z * h, None

    h0 = jnp.zeros((B, H), jnp.float32)
    h_last, _ = jax.lax.scan(step, h0, x_tm)
    return h_last @ raw["w_lin"].T + raw["b_lin"]


if __name__ == "__main__":
    # Small shapes consistent with the module: input_shape=(4,), output_shape=(3,)
    B, C, T = 2, 4, 8          # batch, input channels, sequence length
    H, O = 32, 3               # hidden_units, output dim

    key = jax.random.PRNGKey(0)
    k_x, k_p = jax.random.split(key)
    x = jax.random.normal(k_x, (B, C, T), jnp.float32)

    raw = init_raw_params(k_p, C, H, O)
    packed = pack_params(raw)

    fwd = jax.jit(create_forward)
    out = jax.block_until_ready(fwd(x, packed))
    ref = reference_forward(x, raw)

    assert out.shape == (B, O)
    # bf16 MXU operands on the per-step hidden matmul -> loosened tolerance
    # vs the pure-f32 reference (expected consequence of the optimization).
    assert jnp.allclose(out, ref, atol=2e-2, rtol=2e-2), (out, ref)

    print("KERNEL_OK")
</pallas_src>

<mosaic_0001>
module attributes {stable_mosaic.version = 11 : i64} {
  func.func @kernel(%arg0: memref<16x4xf32, #tpu.memory_space<vmem>>, %arg1: memref<4x384xf32, #tpu.memory_space<vmem>>, %arg2: memref<1x384xf32, #tpu.memory_space<vmem>>, %arg3: memref<128x384xbf16, #tpu.memory_space<vmem>>, %arg4: memref<1x128xf32, #tpu.memory_space<vmem>>, %arg5: memref<128x3xf32, #tpu.memory_space<vmem>>, %arg6: memref<1x3xf32, #tpu.memory_space<vmem>>, %arg7: memref<2x3xf32, #tpu.memory_space<vmem>>) attributes {dimension_semantics = [], scalar_prefetch = 0 : i64, scratch_operands = 0 : i64, tpu.core_type = #tpu.core_type<tc>} {
    %c0 = arith.constant 0 : index
    %c0_0 = arith.constant 0 : index
    %0 = vector.load %arg0[%c0, %c0_0] : memref<16x4xf32, #tpu.memory_space<vmem>>, vector<16x4xf32>
    %c0_1 = arith.constant 0 : index
    %c0_2 = arith.constant 0 : index
    %1 = vector.load %arg1[%c0_1, %c0_2] : memref<4x384xf32, #tpu.memory_space<vmem>>, vector<4x384xf32>
    %cst = arith.constant dense<0.000000e+00> : vector<16x384xf32>
    %2 = tpu.matmul %0, %1, %cst {dimension_numbers = #tpu.dot_dimension_numbers<[1], [0], [0], [1], [0, 0, 1, 1], [], []>} : vector<16x4xf32>, vector<4x384xf32>, vector<16x384xf32> -> vector<16x384xf32>
    %c0_3 = arith.constant 0 : index
    %c0_4 = arith.constant 0 : index
    %3 = vector.load %arg2[%c0_3, %c0_4] : memref<1x384xf32, #tpu.memory_space<vmem>>, vector<1x384xf32>
    %4 = vector.broadcast %3 : vector<1x384xf32> to vector<16x384xf32>
    %5 = arith.addf %2, %4 : vector<16x384xf32>
    %c0_5 = arith.constant 0 : index
    %c0_6 = arith.constant 0 : index
    %6 = vector.load %arg3[%c0_5, %c0_6] : memref<128x384xbf16, #tpu.memory_space<vmem>>, vector<128x384xbf16>
    %c0_7 = arith.constant 0 : index
    %c0_8 = arith.constant 0 : index
    %7 = vector.load %arg4[%c0_7, %c0_8] : memref<1x128xf32, #tpu.memory_space<vmem>>, vector<1x128xf32>
    %8 = vector.shape_cast %7 : vector<1x128xf32> to vector<1x128xf32>
    %9 = vector.broadcast %8 : vector<1x128xf32> to vector<2x128xf32>
    %cst_9 = arith.constant 0.000000e+00 : f32
    %10 = vector.broadcast %cst_9 : f32 to vector<2x128xf32>
    %11 = vector.extract_strided_slice %5 {offsets = [0, 0], sizes = [2, 384], strides = [1, 1]} : vector<16x384xf32> to vector<2x384xf32>
    %12 = arith.truncf %10 : vector<2x128xf32> to vector<2x128xbf16>
    %cst_10 = arith.constant dense<0.000000e+00> : vector<2x384xf32>
    %13 = tpu.matmul %12, %6, %cst_10 {dimension_numbers = #tpu.dot_dimension_numbers<[1], [0], [0], [1], [0, 0, 1, 1], [], []>} : vector<2x128xbf16>, vector<128x384xbf16>, vector<2x384xf32> -> vector<2x384xf32>
    %14 = vector.extract_strided_slice %11 {offsets = [0, 0], sizes = [2, 128], strides = [1, 1]} : vector<2x384xf32> to vector<2x128xf32>
    %15 = vector.extract_strided_slice %13 {offsets = [0, 0], sizes = [2, 128], strides = [1, 1]} : vector<2x384xf32> to vector<2x128xf32>
    %16 = arith.addf %14, %15 : vector<2x128xf32>
    %cst_11 = arith.constant 5.000000e-01 : f32
    %17 = vector.broadcast %cst_11 : f32 to vector<2x128xf32>
    %18 = arith.mulf %17, %16 : vector<2x128xf32>
    %19 = math.tanh %18 : vector<2x128xf32>
    %cst_12 = arith.constant 5.000000e-01 : f32
    %20 = vector.broadcast %cst_12 : f32 to vector<2x128xf32>
    %21 = arith.mulf %20, %19 : vector<2x128xf32>
    %cst_13 = arith.constant 5.000000e-01 : f32
    %22 = vector.broadcast %cst_13 : f32 to vector<2x128xf32>
    %23 = arith.addf %21, %22 : vector<2x128xf32>
    %24 = vector.extract_strided_slice %11 {offsets = [0, 128], sizes = [2, 128], strides = [1, 1]} : vector<2x384xf32> to vector<2x128xf32>
    %25 = vector.extract_strided_slice %13 {offsets = [0, 128], sizes = [2, 128], strides = [1, 1]} : vector<2x384xf32> to vector<2x128xf32>
    %26 = arith.addf %24, %25 : vector<2x128xf32>
    %cst_14 = arith.constant 5.000000e-01 : f32
    %27 = vector.broadcast %cst_14 : f32 to vector<2x128xf32>
    %28 = arith.mulf %27, %26 : vector<2x128xf32>
    %29 = math.tanh %28 : vector<2x128xf32>
    %cst_15 = arith.constant 5.000000e-01 : f32
    %30 = vector.broadcast %cst_15 : f32 to vector<2x128xf32>
    %31 = arith.mulf %30, %29 : vector<2x128xf32>
    %cst_16 = arith.constant 5.000000e-01 : f32
    %32 = vector.broadcast %cst_16 : f32 to vector<2x128xf32>
    %33 = arith.addf %31, %32 : vector<2x128xf32>
    %34 = vector.extract_strided_slice %11 {offsets = [0, 256], sizes = [2, 128], strides = [1, 1]} : vector<2x384xf32> to vector<2x128xf32>
    %35 = vector.extract_strided_slice %13 {offsets = [0, 256], sizes = [2, 128], strides = [1, 1]} : vector<2x384xf32> to vector<2x128xf32>
    %36 = arith.addf %35, %9 : vector<2x128xf32>
    %37 = arith.mulf %23, %36 : vector<2x128xf32>
    %38 = arith.addf %34, %37 : vector<2x128xf32>
    %39 = math.tanh %38 : vector<2x128xf32>
    %40 = arith.subf %10, %39 : vector<2x128xf32>
    %41 = arith.mulf %33, %40 : vector<2x128xf32>
    %42 = arith.addf %39, %41 : vector<2x128xf32>
    %43 = vector.extract_strided_slice %5 {offsets = [2, 0], sizes = [2, 384], strides = [1, 1]} : vector<16x384xf32> to vector<2x384xf32>
    %44 = arith.truncf %42 : vector<2x128xf32> to vector<2x128xbf16>
    %cst_17 = arith.constant dense<0.000000e+00> : vector<2x384xf32>
    %45 = tpu.matmul %44, %6, %cst_17 {dimension_numbers = #tpu.dot_dimension_numbers<[1], [0], [0], [1], [0, 0, 1, 1], [], []>} : vector<2x128xbf16>, vector<128x384xbf16>, vector<2x384xf32> -> vector<2x384xf32>
    %46 = vector.extract_strided_slice %43 {offsets = [0, 0], sizes = [2, 128], strides = [1, 1]} : vector<2x384xf32> to vector<2x128xf32>
    %47 = vector.extract_strided_slice %45 {offsets = [0, 0], sizes = [2, 128], strides = [1, 1]} : vector<2x384xf32> to vector<2x128xf32>
    %48 = arith.addf %46, %47 : vector<2x128xf32>
    %cst_18 = arith.constant 5.000000e-01 : f32
    %49 = vector.broadcast %cst_18 : f32 to vector<2x128xf32>
    %50 = arith.mulf %49, %48 : vector<2x128xf32>
    %51 = math.tanh %50 : vector<2x128xf32>
    %cst_19 = arith.constant 5.000000e-01 : f32
    %52 = vector.broadcast %cst_19 : f32 to vector<2x128xf32>
    %53 = arith.mulf %52, %51 : vector<2x128xf32>
    %cst_20 = arith.constant 5.000000e-01 : f32
    %54 = vector.broadcast %cst_20 : f32 to vector<2x128xf32>
    %55 = arith.addf %53, %54 : vector<2x128xf32>
    %56 = vector.extract_strided_slice %43 {offsets = [0, 128], sizes = [2, 128], strides = [1, 1]} : vector<2x384xf32> to vector<2x128xf32>
    %57 = vector.extract_strided_slice %45 {offsets = [0, 128], sizes = [2, 128], strides = [1, 1]} : vector<2x384xf32> to vector<2x128xf32>
    %58 = arith.addf %56, %57 : vector<2x128xf32>
    %cst_21 = arith.constant 5.000000e-01 : f32
    %59 = vector.broadcast %cst_21 : f32 to vector<2x128xf32>
    %60 = arith.mulf %59, %58 : vector<2x128xf32>
    %61 = math.tanh %60 : vector<2x128xf32>
    %cst_22 = arith.constant 5.000000e-01 : f32
    %62 = vector.broadcast %cst_22 : f32 to vector<2x128xf32>
    %63 = arith.mulf %62, %61 : vector<2x128xf32>
    %cst_23 = arith.constant 5.000000e-01 : f32
    %64 = vector.broadcast %cst_23 : f32 to vector<2x128xf32>
    %65 = arith.addf %63, %64 : vector<2x128xf32>
    %66 = vector.extract_strided_slice %43 {offsets = [0, 256], sizes = [2, 128], strides = [1, 1]} : vector<2x384xf32> to vector<2x128xf32>
    %67 = vector.extract_strided_slice %45 {offsets = [0, 256], sizes = [2, 128], strides = [1, 1]} : vector<2x384xf32> to vector<2x128xf32>
    %68 = arith.addf %67, %9 : vector<2x128xf32>
    %69 = arith.mulf %55, %68 : vector<2x128xf32>
    %70 = arith.addf %66, %69 : vector<2x128xf32>
    %71 = math.tanh %70 : vector<2x128xf32>
    %72 = arith.subf %42, %71 : vector<2x128xf32>
    %73 = arith.mulf %65, %72 : vector<2x128xf32>
    %74 = arith.addf %71, %73 : vector<2x128xf32>
    %75 = vector.extract_strided_slice %5 {offsets = [4, 0], sizes = [2, 384], strides = [1, 1]} : vector<16x384xf32> to vector<2x384xf32>
    %76 = arith.truncf %74 : vector<2x128xf32> to vector<2x128xbf16>
    %cst_24 = arith.constant dense<0.000000e+00> : vector<2x384xf32>
    %77 = tpu.matmul %76, %6, %cst_24 {dimension_numbers = #tpu.dot_dimension_numbers<[1], [0], [0], [1], [0, 0, 1, 1], [], []>} : vector<2x128xbf16>, vector<128x384xbf16>, vector<2x384xf32> -> vector<2x384xf32>
    %78 = vector.extract_strided_slice %75 {offsets = [0, 0], sizes = [2, 128], strides = [1, 1]} : vector<2x384xf32> to vector<2x128xf32>
    %79 = vector.extract_strided_slice %77 {offsets = [0, 0], sizes = [2, 128], strides = [1, 1]} : vector<2x384xf32> to vector<2x128xf32>
    %80 = arith.addf %78, %79 : vector<2x128xf32>
    %cst_25 = arith.constant 5.000000e-01 : f32
    %81 = vector.broadcast %cst_25 : f32 to vector<2x128xf32>
    %82 = arith.mulf %81, %80 : vector<2x128xf32>
    %83 = math.tanh %82 : vector<2x128xf32>
    %cst_26 = arith.constant 5.000000e-01 : f32
    %84 = vector.broadcast %cst_26 : f32 to vector<2x128xf32>
    %85 = arith.mulf %84, %83 : vector<2x128xf32>
    %cst_27 = arith.constant 5.000000e-01 : f32
    %86 = vector.broadcast %cst_27 : f32 to vector<2x128xf32>
    %87 = arith.addf %85, %86 : vector<2x128xf32>
    %88 = vector.extract_strided_slice %75 {offsets = [0, 128], sizes = [2, 128], strides = [1, 1]} : vector<2x384xf32> to vector<2x128xf32>
    %89 = vector.extract_strided_slice %77 {offsets = [0, 128], sizes = [2, 128], strides = [1, 1]} : vector<2x384xf32> to vector<2x128xf32>
    %90 = arith.addf %88, %89 : vector<2x128xf32>
    %cst_28 = arith.constant 5.000000e-01 : f32
    %91 = vector.broadcast %cst_28 : f32 to vector<2x128xf32>
    %92 = arith.mulf %91, %90 : vector<2x128xf32>
    %93 = math.tanh %92 : vector<2x128xf32>
    %cst_29 = arith.constant 5.000000e-01 : f32
    %94 = vector.broadcast %cst_29 : f32 to vector<2x128xf32>
    %95 = arith.mulf %94, %93 : vector<2x128xf32>
    %cst_30 = arith.constant 5.000000e-01 : f32
    %96 = vector.broadcast %cst_30 : f32 to vector<2x128xf32>
    %97 = arith.addf %95, %96 : vector<2x128xf32>
    %98 = vector.extract_strided_slice %75 {offsets = [0, 256], sizes = [2, 128], strides = [1, 1]} : vector<2x384xf32> to vector<2x128xf32>
    %99 = vector.extract_strided_slice %77 {offsets = [0, 256], sizes = [2, 128], strides = [1, 1]} : vector<2x384xf32> to vector<2x128xf32>
    %100 = arith.addf %99, %9 : vector<2x128xf32>
    %101 = arith.mulf %87, %100 : vector<2x128xf32>
    %102 = arith.addf %98, %101 : vector<2x128xf32>
    %103 = math.tanh %102 : vector<2x128xf32>
    %104 = arith.subf %74, %103 : vector<2x128xf32>
    %105 = arith.mulf %97, %104 : vector<2x128xf32>
    %106 = arith.addf %103, %105 : vector<2x128xf32>
    %107 = vector.extract_strided_slice %5 {offsets = [6, 0], sizes = [2, 384], strides = [1, 1]} : vector<16x384xf32> to vector<2x384xf32>
    %108 = arith.truncf %106 : vector<2x128xf32> to vector<2x128xbf16>
    %cst_31 = arith.constant dense<0.000000e+00> : vector<2x384xf32>
    %109 = tpu.matmul %108, %6, %cst_31 {dimension_numbers = #tpu.dot_dimension_numbers<[1], [0], [0], [1], [0, 0, 1, 1], [], []>} : vector<2x128xbf16>, vector<128x384xbf16>, vector<2x384xf32> -> vector<2x384xf32>
    %110 = vector.extract_strided_slice %107 {offsets = [0, 0], sizes = [2, 128], strides = [1, 1]} : vector<2x384xf32> to vector<2x128xf32>
    %111 = vector.extract_strided_slice %109 {offsets = [0, 0], sizes = [2, 128], strides = [1, 1]} : vector<2x384xf32> to vector<2x128xf32>
    %112 = arith.addf %110, %111 : vector<2x128xf32>
    %cst_32 = arith.constant 5.000000e-01 : f32
    %113 = vector.broadcast %cst_32 : f32 to vector<2x128xf32>
    %114 = arith.mulf %113, %112 : vector<2x128xf32>
    %115 = math.tanh %114 : vector<2x128xf32>
    %cst_33 = arith.constant 5.000000e-01 : f32
    %116 = vector.broadcast %cst_33 : f32 to vector<2x128xf32>
    %117 = arith.mulf %116, %115 : vector<2x128xf32>
    %cst_34 = arith.constant 5.000000e-01 : f32
    %118 = vector.broadcast %cst_34 : f32 to vector<2x128xf32>
    %119 = arith.addf %117, %118 : vector<2x128xf32>
    %120 = vector.extract_strided_slice %107 {offsets = [0, 128], sizes = [2, 128], strides = [1, 1]} : vector<2x384xf32> to vector<2x128xf32>
    %121 = vector.extract_strided_slice %109 {offsets = [0, 128], sizes = [2, 128], strides = [1, 1]} : vector<2x384xf32> to vector<2x128xf32>
    %122 = arith.addf %120, %121 : vector<2x128xf32>
    %cst_35 = arith.constant 5.000000e-01 : f32
    %123 = vector.broadcast %cst_35 : f32 to vector<2x128xf32>
    %124 = arith.mulf %123, %122 : vector<2x128xf32>
    %125 = math.tanh %124 : vector<2x128xf32>
    %cst_36 = arith.constant 5.000000e-01 : f32
    %126 = vector.broadcast %cst_36 : f32 to vector<2x128xf32>
    %127 = arith.mulf %126, %125 : vector<2x128xf32>
    %cst_37 = arith.constant 5.000000e-01 : f32
    %128 = vector.broadcast %cst_37 : f32 to vector<2x128xf32>
    %129 = arith.addf %127, %128 : vector<2x128xf32>
    %130 = vector.extract_strided_slice %107 {offsets = [0, 256], sizes = [2, 128], strides = [1, 1]} : vector<2x384xf32> to vector<2x128xf32>
    %131 = vector.extract_strided_slice %109 {offsets = [0, 256], sizes = [2, 128], strides = [1, 1]} : vector<2x384xf32> to vector<2x128xf32>
    %132 = arith.addf %131, %9 : vector<2x128xf32>
    %133 = arith.mulf %119, %132 : vector<2x128xf32>
    %134 = arith.addf %130, %133 : vector<2x128xf32>
    %135 = math.tanh %134 : vector<2x128xf32>
    %136 = arith.subf %106, %135 : vector<2x128xf32>
    %137 = arith.mulf %129, %136 : vector<2x128xf32>
    %138 = arith.addf %135, %137 : vector<2x128xf32>
    %139 = vector.extract_strided_slice %5 {offsets = [8, 0], sizes = [2, 384], strides = [1, 1]} : vector<16x384xf32> to vector<2x384xf32>
    %140 = arith.truncf %138 : vector<2x128xf32> to vector<2x128xbf16>
    %cst_38 = arith.constant dense<0.000000e+00> : vector<2x384xf32>
    %141 = tpu.matmul %140, %6, %cst_38 {dimension_numbers = #tpu.dot_dimension_numbers<[1], [0], [0], [1], [0, 0, 1, 1], [], []>} : vector<2x128xbf16>, vector<128x384xbf16>, vector<2x384xf32> -> vector<2x384xf32>
    %142 = vector.extract_strided_slice %139 {offsets = [0, 0], sizes = [2, 128], strides = [1, 1]} : vector<2x384xf32> to vector<2x128xf32>
    %143 = vector.extract_strided_slice %141 {offsets = [0, 0], sizes = [2, 128], strides = [1, 1]} : vector<2x384xf32> to vector<2x128xf32>
    %144 = arith.addf %142, %143 : vector<2x128xf32>
    %cst_39 = arith.constant 5.000000e-01 : f32
    %145 = vector.broadcast %cst_39 : f32 to vector<2x128xf32>
    %146 = arith.mulf %145, %144 : vector<2x128xf32>
    %147 = math.tanh %146 : vector<2x128xf32>
    %cst_40 = arith.constant 5.000000e-01 : f32
    %148 = vector.broadcast %cst_40 : f32 to vector<2x128xf32>
    %149 = arith.mulf %148, %147 : vector<2x128xf32>
    %cst_41 = arith.constant 5.000000e-01 : f32
    %150 = vector.broadcast %cst_41 : f32 to vector<2x128xf32>
    %151 = arith.addf %149, %150 : vector<2x128xf32>
    %152 = vector.extract_strided_slice %139 {offsets = [0, 128], sizes = [2, 128], strides = [1, 1]} : vector<2x384xf32> to vector<2x128xf32>
    %153 = vector.extract_strided_slice %141 {offsets = [0, 128], sizes = [2, 128], strides = [1, 1]} : vector<2x384xf32> to vector<2x128xf32>
    %154 = arith.addf %152, %153 : vector<2x128xf32>
    %cst_42 = arith.constant 5.000000e-01 : f32
    %155 = vector.broadcast %cst_42 : f32 to vector<2x128xf32>
    %156 = arith.mulf %155, %154 : vector<2x128xf32>
    %157 = math.tanh %156 : vector<2x128xf32>
    %cst_43 = arith.constant 5.000000e-01 : f32
    %158 = vector.broadcast %cst_43 : f32 to vector<2x128xf32>
    %159 = arith.mulf %158, %157 : vector<2x128xf32>
    %cst_44 = arith.constant 5.000000e-01 : f32
    %160 = vector.broadcast %cst_44 : f32 to vector<2x128xf32>
    %161 = arith.addf %159, %160 : vector<2x128xf32>
    %162 = vector.extract_strided_slice %139 {offsets = [0, 256], sizes = [2, 128], strides = [1, 1]} : vector<2x384xf32> to vector<2x128xf32>
    %163 = vector.extract_strided_slice %141 {offsets = [0, 256], sizes = [2, 128], strides = [1, 1]} : vector<2x384xf32> to vector<2x128xf32>
    %164 = arith.addf %163, %9 : vector<2x128xf32>
    %165 = arith.mulf %151, %164 : vector<2x128xf32>
    %166 = arith.addf %162, %165 : vector<2x128xf32>
    %167 = math.tanh %166 : vector<2x128xf32>
    %168 = arith.subf %138, %167 : vector<2x128xf32>
    %169 = arith.mulf %161, %168 : vector<2x128xf32>
    %170 = arith.addf %167, %169 : vector<2x128xf32>
    %171 = vector.extract_strided_slice %5 {offsets = [10, 0], sizes = [2, 384], strides = [1, 1]} : vector<16x384xf32> to vector<2x384xf32>
    %172 = arith.truncf %170 : vector<2x128xf32> to vector<2x128xbf16>
    %cst_45 = arith.constant dense<0.000000e+00> : vector<2x384xf32>
    %173 = tpu.matmul %172, %6, %cst_45 {dimension_numbers = #tpu.dot_dimension_numbers<[1], [0], [0], [1], [0, 0, 1, 1], [], []>} : vector<2x128xbf16>, vector<128x384xbf16>, vector<2x384xf32> -> vector<2x384xf32>
    %174 = vector.extract_strided_slice %171 {offsets = [0, 0], sizes = [2, 128], strides = [1, 1]} : vector<2x384xf32> to vector<2x128xf32>
    %175 = vector.extract_strided_slice %173 {offsets = [0, 0], sizes = [2, 128], strides = [1, 1]} : vector<2x384xf32> to vector<2x128xf32>
    %176 = arith.addf %174, %175 : vector<2x128xf32>
    %cst_46 = arith.constant 5.000000e-01 : f32
    %177 = vector.broadcast %cst_46 : f32 to vector<2x128xf32>
    %178 = arith.mulf %177, %176 : vector<2x128xf32>
    %179 = math.tanh %178 : vector<2x128xf32>
    %cst_47 = arith.constant 5.000000e-01 : f32
    %180 = vector.broadcast %cst_47 : f32 to vector<2x128xf32>
    %181 = arith.mulf %180, %179 : vector<2x128xf32>
    %cst_48 = arith.constant 5.000000e-01 : f32
    %182 = vector.broadcast %cst_48 : f32 to vector<2x128xf32>
    %183 = arith.addf %181, %182 : vector<2x128xf32>
    %184 = vector.extract_strided_slice %171 {offsets = [0, 128], sizes = [2, 128], strides = [1, 1]} : vector<2x384xf32> to vector<2x128xf32>
    %185 = vector.extract_strided_slice %173 {offsets = [0, 128], sizes = [2, 128], strides = [1, 1]} : vector<2x384xf32> to vector<2x128xf32>
    %186 = arith.addf %184, %185 : vector<2x128xf32>
    %cst_49 = arith.constant 5.000000e-01 : f32
    %187 = vector.broadcast %cst_49 : f32 to vector<2x128xf32>
    %188 = arith.mulf %187, %186 : vector<2x128xf32>
    %189 = math.tanh %188 : vector<2x128xf32>
    %cst_50 = arith.constant 5.000000e-01 : f32
    %190 = vector.broadcast %cst_50 : f32 to vector<2x128xf32>
    %191 = arith.mulf %190, %189 : vector<2x128xf32>
    %cst_51 = arith.constant 5.000000e-01 : f32
    %192 = vector.broadcast %cst_51 : f32 to vector<2x128xf32>
    %193 = arith.addf %191, %192 : vector<2x128xf32>
    %194 = vector.extract_strided_slice %171 {offsets = [0, 256], sizes = [2, 128], strides = [1, 1]} : vector<2x384xf32> to vector<2x128xf32>
    %195 = vector.extract_strided_slice %173 {offsets = [0, 256], sizes = [2, 128], strides = [1, 1]} : vector<2x384xf32> to vector<2x128xf32>
    %196 = arith.addf %195, %9 : vector<2x128xf32>
    %197 = arith.mulf %183, %196 : vector<2x128xf32>
    %198 = arith.addf %194, %197 : vector<2x128xf32>
    %199 = math.tanh %198 : vector<2x128xf32>
    %200 = arith.subf %170, %199 : vector<2x128xf32>
    %201 = arith.mulf %193, %200 : vector<2x128xf32>
    %202 = arith.addf %199, %201 : vector<2x128xf32>
    %203 = vector.extract_strided_slice %5 {offsets = [12, 0], sizes = [2, 384], strides = [1, 1]} : vector<16x384xf32> to vector<2x384xf32>
    %204 = arith.truncf %202 : vector<2x128xf32> to vector<2x128xbf16>
    %cst_52 = arith.constant dense<0.000000e+00> : vector<2x384xf32>
    %205 = tpu.matmul %204, %6, %cst_52 {dimension_numbers = #tpu.dot_dimension_numbers<[1], [0], [0], [1], [0, 0, 1, 1], [], []>} : vector<2x128xbf16>, vector<128x384xbf16>, vector<2x384xf32> -> vector<2x384xf32>
    %206 = vector.extract_strided_slice %203 {offsets = [0, 0], sizes = [2, 128], strides = [1, 1]} : vector<2x384xf32> to vector<2x128xf32>
    %207 = vector.extract_strided_slice %205 {offsets = [0, 0], sizes = [2, 128], strides = [1, 1]} : vector<2x384xf32> to vector<2x128xf32>
    %208 = arith.addf %206, %207 : vector<2x128xf32>
    %cst_53 = arith.constant 5.000000e-01 : f32
    %209 = vector.broadcast %cst_53 : f32 to vector<2x128xf32>
    %210 = arith.mulf %209, %208 : vector<2x128xf32>
    %211 = math.tanh %210 : vector<2x128xf32>
    %cst_54 = arith.constant 5.000000e-01 : f32
    %212 = vector.broadcast %cst_54 : f32 to vector<2x128xf32>
    %213 = arith.mulf %212, %211 : vector<2x128xf32>
    %cst_55 = arith.constant 5.000000e-01 : f32
    %214 = vector.broadcast %cst_55 : f32 to vector<2x128xf32>
    %215 = arith.addf %213, %214 : vector<2x128xf32>
    %216 = vector.extract_strided_slice %203 {offsets = [0, 128], sizes = [2, 128], strides = [1, 1]} : vector<2x384xf32> to vector<2x128xf32>
    %217 = vector.extract_strided_slice %205 {offsets = [0, 128], sizes = [2, 128], strides = [1, 1]} : vector<2x384xf32> to vector<2x128xf32>
    %218 = arith.addf %216, %217 : vector<2x128xf32>
    %cst_56 = arith.constant 5.000000e-01 : f32
    %219 = vector.broadcast %cst_56 : f32 to vector<2x128xf32>
    %220 = arith.mulf %219, %218 : vector<2x128xf32>
    %221 = math.tanh %220 : vector<2x128xf32>
    %cst_57 = arith.constant 5.000000e-01 : f32
    %222 = vector.broadcast %cst_57 : f32 to vector<2x128xf32>
    %223 = arith.mulf %222, %221 : vector<2x128xf32>
    %cst_58 = arith.constant 5.000000e-01 : f32
    %224 = vector.broadcast %cst_58 : f32 to vector<2x128xf32>
    %225 = arith.addf %223, %224 : vector<2x128xf32>
    %226 = vector.extract_strided_slice %203 {offsets = [0, 256], sizes = [2, 128], strides = [1, 1]} : vector<2x384xf32> to vector<2x128xf32>
    %227 = vector.extract_strided_slice %205 {offsets = [0, 256], sizes = [2, 128], strides = [1, 1]} : vector<2x384xf32> to vector<2x128xf32>
    %228 = arith.addf %227, %9 : vector<2x128xf32>
    %229 = arith.mulf %215, %228 : vector<2x128xf32>
    %230 = arith.addf %226, %229 : vector<2x128xf32>
    %231 = math.tanh %230 : vector<2x128xf32>
    %232 = arith.subf %202, %231 : vector<2x128xf32>
    %233 = arith.mulf %225, %232 : vector<2x128xf32>
    %234 = arith.addf %231, %233 : vector<2x128xf32>
    %235 = vector.extract_strided_slice %5 {offsets = [14, 0], sizes = [2, 384], strides = [1, 1]} : vector<16x384xf32> to vector<2x384xf32>
    %236 = arith.truncf %234 : vector<2x128xf32> to vector<2x128xbf16>
    %cst_59 = arith.constant dense<0.000000e+00> : vector<2x384xf32>
    %237 = tpu.matmul %236, %6, %cst_59 {dimension_numbers = #tpu.dot_dimension_numbers<[1], [0], [0], [1], [0, 0, 1, 1], [], []>} : vector<2x128xbf16>, vector<128x384xbf16>, vector<2x384xf32> -> vector<2x384xf32>
    %238 = vector.extract_strided_slice %235 {offsets = [0, 0], sizes = [2, 128], strides = [1, 1]} : vector<2x384xf32> to vector<2x128xf32>
    %239 = vector.extract_strided_slice %237 {offsets = [0, 0], sizes = [2, 128], strides = [1, 1]} : vector<2x384xf32> to vector<2x128xf32>
    %240 = arith.addf %238, %239 : vector<2x128xf32>
    %cst_60 = arith.constant 5.000000e-01 : f32
    %241 = vector.broadcast %cst_60 : f32 to vector<2x128xf32>
    %242 = arith.mulf %241, %240 : vector<2x128xf32>
    %243 = math.tanh %242 : vector<2x128xf32>
    %cst_61 = arith.constant 5.000000e-01 : f32
    %244 = vector.broadcast %cst_61 : f32 to vector<2x128xf32>
    %245 = arith.mulf %244, %243 : vector<2x128xf32>
    %cst_62 = arith.constant 5.000000e-01 : f32
    %246 = vector.broadcast %cst_62 : f32 to vector<2x128xf32>
    %247 = arith.addf %245, %246 : vector<2x128xf32>
    %248 = vector.extract_strided_slice %235 {offsets = [0, 128], sizes = [2, 128], strides = [1, 1]} : vector<2x384xf32> to vector<2x128xf32>
    %249 = vector.extract_strided_slice %237 {offsets = [0, 128], sizes = [2, 128], strides = [1, 1]} : vector<2x384xf32> to vector<2x128xf32>
    %250 = arith.addf %248, %249 : vector<2x128xf32>
    %cst_63 = arith.constant 5.000000e-01 : f32
    %251 = vector.broadcast %cst_63 : f32 to vector<2x128xf32>
    %252 = arith.mulf %251, %250 : vector<2x128xf32>
    %253 = math.tanh %252 : vector<2x128xf32>
    %cst_64 = arith.constant 5.000000e-01 : f32
    %254 = vector.broadcast %cst_64 : f32 to vector<2x128xf32>
    %255 = arith.mulf %254, %253 : vector<2x128xf32>
    %cst_65 = arith.constant 5.000000e-01 : f32
    %256 = vector.broadcast %cst_65 : f32 to vector<2x128xf32>
    %257 = arith.addf %255, %256 : vector<2x128xf32>
    %258 = vector.extract_strided_slice %235 {offsets = [0, 256], sizes = [2, 128], strides = [1, 1]} : vector<2x384xf32> to vector<2x128xf32>
    %259 = vector.extract_strided_slice %237 {offsets = [0, 256], sizes = [2, 128], strides = [1, 1]} : vector<2x384xf32> to vector<2x128xf32>
    %260 = arith.addf %259, %9 : vector<2x128xf32>
    %261 = arith.mulf %247, %260 : vector<2x128xf32>
    %262 = arith.addf %258, %261 : vector<2x128xf32>
    %263 = math.tanh %262 : vector<2x128xf32>
    %264 = arith.subf %234, %263 : vector<2x128xf32>
    %265 = arith.mulf %257, %264 : vector<2x128xf32>
    %266 = arith.addf %263, %265 : vector<2x128xf32>
    %c0_66 = arith.constant 0 : index
    %c0_67 = arith.constant 0 : index
    %267 = vector.load %arg5[%c0_66, %c0_67] : memref<128x3xf32, #tpu.memory_space<vmem>>, vector<128x3xf32>
    %cst_68 = arith.constant dense<0.000000e+00> : vector<2x3xf32>
    %268 = tpu.matmul %266, %267, %cst_68 {dimension_numbers = #tpu.dot_dimension_numbers<[1], [0], [0], [1], [0, 0, 1, 1], [], []>} : vector<2x128xf32>, vector<128x3xf32>, vector<2x3xf32> -> vector<2x3xf32>
    %c0_69 = arith.constant 0 : index
    %c0_70 = arith.constant 0 : index
    %269 = vector.load %arg6[%c0_69, %c0_70] : memref<1x3xf32, #tpu.memory_space<vmem>>, vector<1x3xf32>
    %270 = vector.broadcast %269 : vector<1x3xf32> to vector<2x3xf32>
    %271 = arith.addf %268, %270 : vector<2x3xf32>
    %c0_71 = arith.constant 0 : index
    %c0_72 = arith.constant 0 : index
    %272 = vector.load %arg7[%c0_71, %c0_72] : memref<2x3xf32, #tpu.memory_space<vmem>>, vector<2x3xf32>
    tpu.vector_store %arg7[%c0_71, %c0_72], %271 {strides = array<i32>} : memref<2x3xf32, #tpu.memory_space<vmem>>, vector<2x3xf32>,
    return
  }
}

</mosaic_0001>

<llo_original>
// kernel: create_forward.1
$region0: #{create_forward.1}
  #allocation0 [shape = 'u32[]', space=smem, size = 0x4, offset = 0x4, fixed_abs, tag = 'smem constant byte address 0x4 - core index']
  #allocation1 [shape = 'u32[144,128]{1,0:T(1,128)}', space=vmem, size = 0x12000, scoped, tag = 'internal scratch']
  %s0 = inlined_call_operand.vmem [shape: f32[16,4], index: 0, kind: input, shape index: {}]
  %s1 = inlined_call_operand.vmem [shape: f32[4,384], index: 1, kind: input, shape index: {}]
  %s2 = inlined_call_operand.vmem [shape: f32[1,384], index: 2, kind: input, shape index: {}]
  %s3 = inlined_call_operand.hbm [shape: bf16[128,384], index: 3, kind: input, shape index: {}]
  %s4 = inlined_call_operand.vmem [shape: f32[1,128], index: 4, kind: input, shape index: {}]
  %s5 = inlined_call_operand.vmem [shape: f32[128,3], index: 5, kind: input, shape index: {}]
  %s6 = inlined_call_operand.vmem [shape: f32[1,3], index: 6, kind: input, shape index: {}]
  %s7 = inlined_call_operand.hbm [shape: f32[2,3], index: 7, kind: output, shape index: {}]
  %s8 = sld [smem:[#allocation0]]
  $region42: #{create_forward.1} parent=0
    _
  %s10 = ssub.s32 1, %s8
  %s11 = scalar_select 0, %s10, %s8
  $region1: #{create_forward.1} parent=0
    #allocation2 [shape = 'u8[98304]{0}', space=vmem, size = 0x18000, scoped, tag = 'input window, operand 3, single buffered']
    #allocation3 [shape = 's32[1]{0}', space=sflag, size = 0x4, scoped, tag = 'scoped memory for create_forward.1']
    #allocation4 [shape = 's32[1]{0}', space=sflag, size = 0x4, scoped, tag = 'scoped memory for create_forward.1']
    #allocation5 [shape = 'u8[1024]{0}', space=vmem, size = 0x400, scoped, tag = 'output window, operand 0, single buffered']
    %12 = vsyncpa [#allocation3], 0
    %13 = vsyncpa [#allocation4], 0
    // Predicated region
    $region2: #{create_forward.1} parent=1 // pred_check
      _
    $region3: #{create_forward.1} parent=1 // pred_check_branch
      %15 = sbr.rel (0) target = $region5
    $region4: #{create_forward.1} parent=1 // pred_region
      _
    $region5: #{create_forward.1} parent=1 // pred_fallthru
      _
    // Predicated region
    $region6: #{create_forward.1} parent=1 // pred_check
      _
    $region7: #{create_forward.1} parent=1 // pred_check_branch
      %17 = sbr.rel (0) target = $region9
    $region8: #{create_forward.1} parent=1 // pred_region
      _
    $region9: #{create_forward.1} parent=1 // pred_fallthru
      _
    // Predicated region
    $region10: #{create_forward.1} parent=1 // pred_check
      _
    $region11: #{create_forward.1} parent=1 // pred_check_branch
      %19 = sbr.rel (0) target = $region13
    $region12: #{create_forward.1} parent=1 // pred_region
      _
    $region13: #{create_forward.1} parent=1 // pred_fallthru
      _
    // Predicated region
    $region14: #{create_forward.1} parent=1 // pred_check
      _
    $region15: #{create_forward.1} parent=1 // pred_check_branch
      %21 = sbr.rel (0) target = $region17
    $region16: #{create_forward.1} parent=1 // pred_region
      %s23 = ssub.s32 3072, 3072
      %24 = vsyncadd [#allocation3], %s23
      %s25 = sshll.u32 [#allocation2], 4
      %s26 = int_to_ptr.vmem [resolvable:$true] %s25
      %31 = dma.hbm_to_vmem [thread:$0]  %s3, 3072, %s26, [#allocation3], 192, 192, 12
    $region17: #{create_forward.1} parent=1 // pred_fallthru
      _
    // Predicated region
    $region18: #{create_forward.1} parent=1 // pred_check
      _
    $region19: #{create_forward.1} parent=1 // pred_check_branch
      %33 = sbr.rel (0) target = $region21
    $region20: #{create_forward.1} parent=1 // pred_region
      _
    $region21: #{create_forward.1} parent=1 // pred_fallthru
      _
    // Predicated region
    $region22: #{create_forward.1} parent=1 // pred_check
      _
    $region23: #{create_forward.1} parent=1 // pred_check_branch
      %35 = sbr.rel (0) target = $region25
    $region24: #{create_forward.1} parent=1 // pred_region
      _
    $region25: #{create_forward.1} parent=1 // pred_fallthru
      _
    // Predicated region
    $region26: #{create_forward.1} parent=1 // pred_check
      _
    $region27: #{create_forward.1} parent=1 // pred_check_branch
      %37 = sbr.rel (0) target = $region29
    $region28: #{create_forward.1} parent=1 // pred_region
      _
    $region29: #{create_forward.1} parent=1 // pred_fallthru
      _
    // Predicated region
    $region30: #{create_forward.1} parent=1 // pred_check
      _
    $region31: #{create_forward.1} parent=1 // pred_check_branch
      %39 = sbr.rel (0) target = $region33
    $region32: #{create_forward.1} parent=1 // pred_region
      %40 = dma.done [#allocation3], 3072
    $region33: #{create_forward.1} parent=1 // pred_fallthru
      _
    %v42 = vld [vmem:[%s0] sm:$0xff]
    %v43 = vld [vmem:[%s0 + $0x8] sm:$0xff]
    %v44 = vld [vmem:[%s1] sm:$0xff]
    %v45 = vld [vmem:[%s1 + $0x8] sm:$0xf]
    %v46 = vld [vmem:[%s2] sm:$0x7]
    %v48 = vlaneseq
    %v49 = vshrl.u32 %v48, 7
    %v50 = vsub.s32 0, %v49
    %v51 = vrot.slane %v46, %v50
    %v52 = vlaneseq
    %v53 = vshrl.u32 %v52, 7
    %v54 = vsub.s32 1, %v53
    %v55 = vrot.slane %v46, %v54
    %v56 = vlaneseq
    %v57 = vshrl.u32 %v56, 7
    %v58 = vsub.s32 2, %v57
    %v59 = vrot.slane %v46, %v58
    %v65 = vcombine.high %v44, %v44
    %vm66 = vcmask 31744
    %v68 = vsel %vm66, %v42, 0
    %v71 = vsel %vm66, %v43, 0
    %vm73 = vcmask 1043456
    %v74 = vsel %vm73, %v44, 0
    %v76 = vsel %vm73, %v65, 0
    %v78 = vsel %vm73, %v45, 0
    %80 = vmatprep.subr.mxu0 %v76
    %81 = vmatpush1.msra.mxu0 %v74
    %82 = vmatprep.subr.mxu0 0.0
    %83 = vmatpush1.msra.mxu0 0.0
    %84 = vmatprep.subr.mxu0 0.0
    %85 = vmatpush1.msra.mxu0 0.0
    %86 = vmatprep.subr.mxu0 0.0
    %87 = vmatpush1.msra.mxu0 0.0
    %88 = vmatprep.subr.mxu0 0.0
    %89 = vmatpush1.msra.mxu0 0.0
    %90 = vmatprep.subr.mxu0 0.0
    %91 = vmatpush1.msra.mxu0 0.0
    %92 = vmatprep.subr.mxu0 0.0
    %93 = vmatpush1.msra.mxu0 0.0
    %94 = vmatprep.subr.mxu0 0.0
    %95 = vmatpush1.msra.mxu0 0.0
    %96 = vmatprep.subr.mxu0 0.0
    %97 = vmatpush1.msra.mxu0 0.0
    %98 = vmatprep.subr.mxu0 0.0
    %99 = vmatpush1.msra.mxu0 0.0
    %100 = vmatprep.subr.mxu0 0.0
    %101 = vmatpush1.msra.mxu0 0.0
    %102 = vmatprep.subr.mxu0 0.0
    %103 = vmatpush1.msra.mxu0 0.0
    %104 = vmatprep.subr.mxu0 0.0
    %105 = vmatpush1.msra.mxu0 0.0
    %106 = vmatprep.subr.mxu0 0.0
    %107 = vmatpush1.msra.mxu0 0.0
    %108 = vmatprep.subr.mxu0 0.0
    %109 = vmatpush1.msra.mxu0 0.0
    %110 = vmatprep.subr.mxu0 0.0
    %111 = vmatpush1.msra.mxu0 0.0
    %112 = vmatprep.subr.mxu0 0.0
    %113 = vmatpush1.msra.mxu0 0.0
    %114 = vmatprep.subr.mxu0 0.0
    %115 = vmatpush1.msra.mxu0 0.0
    %116 = vmatprep.subr.mxu0 0.0
    %117 = vmatpush1.msra.mxu0 0.0
    %118 = vmatprep.subr.mxu0 0.0
    %119 = vmatpush1.msra.mxu0 0.0
    %120 = vmatprep.subr.mxu0 0.0
    %121 = vmatpush1.msra.mxu0 0.0
    %122 = vmatprep.subr.mxu0 0.0
    %123 = vmatpush1.msra.mxu0 0.0
    %124 = vmatprep.subr.mxu0 0.0
    %125 = vmatpush1.msra.mxu0 0.0
    %126 = vmatprep.subr.mxu0 0.0
    %127 = vmatpush1.msra.mxu0 0.0
    %128 = vmatprep.subr.mxu0 0.0
    %129 = vmatpush1.msra.mxu0 0.0
    %130 = vmatprep.subr.mxu0 0.0
    %131 = vmatpush1.msra.mxu0 0.0
    %132 = vmatprep.subr.mxu0 0.0
    %133 = vmatpush1.msra.mxu0 0.0
    %134 = vmatprep.subr.mxu0 0.0
    %135 = vmatpush1.msra.mxu0 0.0
    %136 = vmatprep.subr.mxu0 0.0
    %137 = vmatpush1.msra.mxu0 0.0
    %138 = vmatprep.subr.mxu0 0.0
    %139 = vmatpush1.msra.mxu0 0.0
    %140 = vmatprep.subr.mxu0 0.0
    %141 = vmatpush1.msra.mxu0 0.0
    %142 = vmatprep.subr.mxu0 0.0
    %143 = vmatpush1.msra.mxu0 0.0
    %144 = vmatprep.mubr.f32.mxu0 0.0
    %145 = vmatmul.mubr.f32.gmra.mrb[0].mxu0 %v68
    %v146 = vpop.f32.mrb[0].mxu0
    %v147 = vadd.f32 %v51, %v146
    %v148 = vpop.f32.mrb[0].mxu0
    %v149 = vadd.f32 %v55, %v148
    %150 = vmatprep.mubr.f32.mxu0 0.0
    %151 = vmatmul.mubr.f32.gmra.mrb[0].mxu0 %v71
    %v152 = vpop.f32.mrb[0].mxu0
    %v153 = vadd.f32 %v51, %v152
    %v154 = vpop.f32.mrb[0].mxu0
    %v155 = vadd.f32 %v55, %v154
    %156 = vdwg.mxu0
    %157 = vmatprep.subr.mxu0 0.0
    %158 = vmatpush1.msra.mxu0 %v78
    %159 = vmatprep.subr.mxu0 0.0
    %160 = vmatpush1.msra.mxu0 0.0
    %161 = vmatprep.subr.mxu0 0.0
    %162 = vmatpush1.msra.mxu0 0.0
    %163 = vmatprep.subr.mxu0 0.0
    %164 = vmatpush1.msra.mxu0 0.0
    %165 = vmatprep.subr.mxu0 0.0
    %166 = vmatpush1.msra.mxu0 0.0
    %167 = vmatprep.subr.mxu0 0.0
    %168 = vmatpush1.msra.mxu0 0.0
    %169 = vmatprep.subr.mxu0 0.0
    %170 = vmatpush1.msra.mxu0 0.0
    %171 = vmatprep.subr.mxu0 0.0
    %172 = vmatpush1.msra.mxu0 0.0
    %173 = vmatprep.subr.mxu0 0.0
    %174 = vmatpush1.msra.mxu0 0.0
    %175 = vmatprep.subr.mxu0 0.0
    %176 = vmatpush1.msra.mxu0 0.0
    %177 = vmatprep.subr.mxu0 0.0
    %178 = vmatpush1.msra.mxu0 0.0
    %179 = vmatprep.subr.mxu0 0.0
    %180 = vmatpush1.msra.mxu0 0.0
    %181 = vmatprep.subr.mxu0 0.0
    %182 = vmatpush1.msra.mxu0 0.0
    %183 = vmatprep.subr.mxu0 0.0
    %184 = vmatpush1.msra.mxu0 0.0
    %185 = vmatprep.subr.mxu0 0.0
    %186 = vmatpush1.msra.mxu0 0.0
    %187 = vmatprep.subr.mxu0 0.0
    %188 = vmatpush1.msra.mxu0 0.0
    %189 = vmatprep.subr.mxu0 0.0
    %190 = vmatpush1.msra.mxu0 0.0
    %191 = vmatprep.subr.mxu0 0.0
    %192 = vmatpush1.msra.mxu0 0.0
    %193 = vmatprep.subr.mxu0 0.0
    %194 = vmatpush1.msra.mxu0 0.0
    %195 = vmatprep.subr.mxu0 0.0
    %196 = vmatpush1.msra.mxu0 0.0
    %197 = vmatprep.subr.mxu0 0.0
    %198 = vmatpush1.msra.mxu0 0.0
    %199 = vmatprep.subr.mxu0 0.0
    %200 = vmatpush1.msra.mxu0 0.0
    %201 = vmatprep.subr.mxu0 0.0
    %202 = vmatpush1.msra.mxu0 0.0
    %203 = vmatprep.subr.mxu0 0.0
    %204 = vmatpush1.msra.mxu0 0.0
    %205 = vmatprep.subr.mxu0 0.0
    %206 = vmatpush1.msra.mxu0 0.0
    %207 = vmatprep.subr.mxu0 0.0
    %208 = vmatpush1.msra.mxu0 0.0
    %209 = vmatprep.subr.mxu0 0.0
    %210 = vmatpush1.msra.mxu0 0.0
    %211 = vmatprep.subr.mxu0 0.0
    %212 = vmatpush1.msra.mxu0 0.0
    %213 = vmatprep.subr.mxu0 0.0
    %214 = vmatpush1.msra.mxu0 0.0
    %215 = vmatprep.subr.mxu0 0.0
    %216 = vmatpush1.msra.mxu0 0.0
    %217 = vmatprep.subr.mxu0 0.0
    %218 = vmatpush1.msra.mxu0 0.0
    %219 = vmatprep.subr.mxu0 0.0
    %220 = vmatpush1.msra.mxu0 0.0
    %221 = vmatprep.mubr.f32.mxu0 0.0
    %222 = vmatmul.mubr.f32.gmra.mrb[0].mxu0 %v68
    %v223 = vpop.f32.mrb[0].mxu0
    %v224 = vadd.f32 %v59, %v223
    %v225 = vpop.f32.mrb[0].mxu0
    %226 = vmatprep.mubr.f32.mxu0 0.0
    %227 = vmatmul.mubr.f32.gmra.mrb[0].mxu0 %v71
    %v228 = vpop.f32.mrb[0].mxu0
    %v229 = vadd.f32 %v59, %v228
    %v230 = vpop.f32.mrb[0].mxu0
    %231 = vdwg.mxu0
    %v232 = vld [vmem:[#allocation2] sm:$0xff]
    %v233 = vld [vmem:[#allocation2 + $0x8] sm:$0xf]
    %v234 = vld [vmem:[#allocation2 + $0xc] sm:$0xff]
    %v235 = vld [vmem:[#allocation2 + $0x14] sm:$0xf]
    %v236 = vld [vmem:[#allocation2 + $0x18] sm:$0xff]
    %v237 = vld [vmem:[#allocation2 + $0x20] sm:$0xf]
    %v238 = vld [vmem:[#allocation2 + $0x24] sm:$0xff]
    %v239 = vld [vmem:[#allocation2 + $0x2c] sm:$0xf]
    %v240 = vld [vmem:[#allocation2 + $0x30] sm:$0xff]
    %v241 = vld [vmem:[#allocation2 + $0x38] sm:$0xf]
    %v242 = vld [vmem:[#allocation2 + $0x3c] sm:$0xff]
    %v243 = vld [vmem:[#allocation2 + $0x44] sm:$0xf]
    %v244 = vld [vmem:[#allocation2 + $0x48] sm:$0xff]
    %v245 = vld [vmem:[#allocation2 + $0x50] sm:$0xf]
    %v246 = vld [vmem:[#allocation2 + $0x54] sm:$0xff]
    %v247 = vld [vmem:[#allocation2 + $0x5c] sm:$0xf]
    %v248 = vld [vmem:[#allocation2 + $0x60] sm:$0xff]
    %v249 = vld [vmem:[#allocation2 + $0x68] sm:$0xf]
    %v250 = vld [vmem:[#allocation2 + $0x6c] sm:$0xff]
    %v251 = vld [vmem:[#allocation2 + $0x74] sm:$0xf]
    %v252 = vld [vmem:[#allocation2 + $0x78] sm:$0xff]
    %v253 = vld [vmem:[#allocation2 + $0x80] sm:$0xf]
    %v254 = vld [vmem:[#allocation2 + $0x84] sm:$0xff]
    %v255 = vld [vmem:[#allocation2 + $0x8c] sm:$0xf]
    %v256 = vld [vmem:[#allocation2 + $0x90] sm:$0xff]
    %v257 = vld [vmem:[#allocation2 + $0x98] sm:$0xf]
    %v258 = vld [vmem:[#allocation2 + $0x9c] sm:$0xff]
    %v259 = vld [vmem:[#allocation2 + $0xa4] sm:$0xf]
    %v260 = vld [vmem:[#allocation2 + $0xa8] sm:$0xff]
    %v261 = vld [vmem:[#allocation2 + $0xb0] sm:$0xf]
    %v262 = vld [vmem:[#allocation2 + $0xb4] sm:$0xff]
    %v263 = vld [vmem:[#allocation2 + $0xbc] sm:$0xf]
    %v264 = vld [vmem:[%s4] sm:$0x1]
    %v266 = vlaneseq
    %v267 = vshrl.u32 %v266, 7
    %v268 = vsub.s32 0, %v267
    %v269 = vrot.slane %v264, %v268
    %v303 = vunpack.c.l.b16 %v232
    %v304 = vunpack.c.h.b16 %v232
    %v305 = vunpack.c.l.b16 %v233
    %v306 = vunpack.c.l.b16 %v234
    %v307 = vunpack.c.h.b16 %v234
    %v308 = vunpack.c.l.b16 %v235
    %v309 = vunpack.c.l.b16 %v236
    %v310 = vunpack.c.h.b16 %v236
    %v311 = vunpack.c.l.b16 %v237
    %v312 = vunpack.c.l.b16 %v238
    %v313 = vunpack.c.h.b16 %v238
    %v314 = vunpack.c.l.b16 %v239
    %v315 = vunpack.c.l.b16 %v240
    %v316 = vunpack.c.h.b16 %v240
    %v317 = vunpack.c.l.b16 %v241
    %v318 = vunpack.c.l.b16 %v242
    %v319 = vunpack.c.h.b16 %v242
    %v320 = vunpack.c.l.b16 %v243
    %v321 = vunpack.c.l.b16 %v244
    %v322 = vunpack.c.h.b16 %v244
    %v323 = vunpack.c.l.b16 %v245
    %v324 = vunpack.c.l.b16 %v246
    %v325 = vunpack.c.h.b16 %v246
    %v326 = vunpack.c.l.b16 %v247
    %v327 = vunpack.c.l.b16 %v248
    %v328 = vunpack.c.h.b16 %v248
    %v329 = vunpack.c.l.b16 %v249
    %v330 = vunpack.c.l.b16 %v250
    %v331 = vunpack.c.h.b16 %v250
    %v332 = vunpack.c.l.b16 %v251
    %v333 = vunpack.c.l.b16 %v252
    %v334 = vunpack.c.h.b16 %v252
    %v335 = vunpack.c.l.b16 %v253
    %v336 = vunpack.c.l.b16 %v254
    %v337 = vunpack.c.h.b16 %v254
    %v338 = vunpack.c.l.b16 %v255
    %v339 = vunpack.c.l.b16 %v256
    %v340 = vunpack.c.h.b16 %v256
    %v341 = vunpack.c.l.b16 %v257
    %v342 = vunpack.c.l.b16 %v258
    %v343 = vunpack.c.h.b16 %v258
    %v344 = vunpack.c.l.b16 %v259
    %v345 = vunpack.c.l.b16 %v260
    %v346 = vunpack.c.h.b16 %v260
    %v347 = vunpack.c.l.b16 %v261
    %v348 = vunpack.c.l.b16 %v262
    %v349 = vunpack.c.h.b16 %v262
    %v350 = vunpack.c.l.b16 %v263
    %v351 = vpack.c.b16 %v306, %v303
    %v352 = vpack.c.b16 %v307, %v304
    %v353 = vpack.c.b16 %v308, %v305
    %v354 = vpack.c.b16 %v312, %v309
    %v355 = vpack.c.b16 %v313, %v310
    %v356 = vpack.c.b16 %v314, %v311
    %v357 = vpack.c.b16 %v318, %v315
    %v358 = vpack.c.b16 %v319, %v316
    %v359 = vpack.c.b16 %v320, %v317
    %v360 = vpack.c.b16 %v324, %v321
    %v361 = vpack.c.b16 %v325, %v322
    %v362 = vpack.c.b16 %v326, %v323
    %v363 = vpack.c.b16 %v330, %v327
    %v364 = vpack.c.b16 %v331, %v328
    %v365 = vpack.c.b16 %v332, %v329
    %v366 = vpack.c.b16 %v336, %v333
    %v367 = vpack.c.b16 %v337, %v334
    %v368 = vpack.c.b16 %v338, %v335
    %v369 = vpack.c.b16 %v342, %v339
    %v370 = vpack.c.b16 %v343, %v340
    %v371 = vpack.c.b16 %v344, %v341
    %v372 = vpack.c.b16 %v348, %v345
    %v373 = vpack.c.b16 %v349, %v346
    %v374 = vpack.c.b16 %v350, %v347
    %399 = vmatprep.subr.bf16.mxu0 %v352
    %400 = vmatpush1.bf16.msra.mxu0 %v351
    %401 = vmatprep.subr.bf16.mxu0 %v355
    %402 = vmatpush1.bf16.msra.mxu0 %v354
    %403 = vmatprep.subr.bf16.mxu0 %v358
    %404 = vmatpush1.bf16.msra.mxu0 %v357
    %405 = vmatprep.subr.bf16.mxu0 %v361
    %406 = vmatpush1.bf16.msra.mxu0 %v360
    %407 = vmatprep.subr.bf16.mxu0 %v364
    %408 = vmatpush1.bf16.msra.mxu0 %v363
    %409 = vmatprep.subr.bf16.mxu0 %v367
    %410 = vmatpush1.bf16.msra.mxu0 %v366
    %411 = vmatprep.subr.bf16.mxu0 %v370
    %412 = vmatpush1.bf16.msra.mxu0 %v369
    %413 = vmatprep.subr.bf16.mxu0 %v373
    %414 = vmatpush1.bf16.msra.mxu0 %v372
    %415 = vmatprep.subr.bf16.mxu0 0
    %416 = vmatpush1.bf16.msra.mxu0 0
    %417 = vmatprep.subr.bf16.mxu0 0
    %418 = vmatpush1.bf16.msra.mxu0 0
    %419 = vmatprep.subr.bf16.mxu0 0
    %420 = vmatpush1.bf16.msra.mxu0 0
    %421 = vmatprep.subr.bf16.mxu0 0
    %422 = vmatpush1.bf16.msra.mxu0 0
    %423 = vmatprep.subr.bf16.mxu0 0
    %424 = vmatpush1.bf16.msra.mxu0 0
    %425 = vmatprep.subr.bf16.mxu0 0
    %426 = vmatpush1.bf16.msra.mxu0 0
    %427 = vmatprep.subr.bf16.mxu0 0
    %428 = vmatpush1.bf16.msra.mxu0 0
    %429 = vmatprep.subr.bf16.mxu0 0
    %430 = vmatpush1.bf16.msra.mxu0 0
    %431 = vmatprep.mubr.bf16.mxu0 0
    %432 = vmatmul.mubr.bf16.gmra.mrb[0].mxu0 0
    %v433 = vpop.f32.mrb[0].mxu0
    %v434 = vadd.f32 0.0, %v433
    %v435 = vpop.f32.mrb[0].mxu0
    %v436 = vadd.f32 0.0, %v435
    %v437 = vpop.f32.mrb[0].mxu0
    %v438 = vpop.f32.mrb[0].mxu0
    %439 = vdwg.mxu0
    %440 = vmatprep.subr.bf16.mxu0 0
    %441 = vmatpush1.bf16.msra.mxu0 %v353
    %442 = vmatprep.subr.bf16.mxu0 0
    %443 = vmatpush1.bf16.msra.mxu0 %v356
    %444 = vmatprep.subr.bf16.mxu0 0
    %445 = vmatpush1.bf16.msra.mxu0 %v359
    %446 = vmatprep.subr.bf16.mxu0 0
    %447 = vmatpush1.bf16.msra.mxu0 %v362
    %448 = vmatprep.subr.bf16.mxu0 0
    %449 = vmatpush1.bf16.msra.mxu0 %v365
    %450 = vmatprep.subr.bf16.mxu0 0
    %451 = vmatpush1.bf16.msra.mxu0 %v368
    %452 = vmatprep.subr.bf16.mxu0 0
    %453 = vmatpush1.bf16.msra.mxu0 %v371
    %454 = vmatprep.subr.bf16.mxu0 0
    %455 = vmatpush1.bf16.msra.mxu0 %v374
    %456 = vmatprep.subr.bf16.mxu0 0
    %457 = vmatpush1.bf16.msra.mxu0 0
    %458 = vmatprep.subr.bf16.mxu0 0
    %459 = vmatpush1.bf16.msra.mxu0 0
    %460 = vmatprep.subr.bf16.mxu0 0
    %461 = vmatpush1.bf16.msra.mxu0 0
    %462 = vmatprep.subr.bf16.mxu0 0
    %463 = vmatpush1.bf16.msra.mxu0 0
    %464 = vmatprep.subr.bf16.mxu0 0
    %465 = vmatpush1.bf16.msra.mxu0 0
    %466 = vmatprep.subr.bf16.mxu0 0
    %467 = vmatpush1.bf16.msra.mxu0 0
    %468 = vmatprep.subr.bf16.mxu0 0
    %469 = vmatpush1.bf16.msra.mxu0 0
    %470 = vmatprep.subr.bf16.mxu0 0
    %471 = vmatpush1.bf16.msra.mxu0 0
    %472 = vmatprep.mubr.bf16.mxu0 0
    %473 = vmatmul.mubr.bf16.gmra.mrb[0].mxu0 0
    %v474 = vpop.f32.mrb[0].mxu0
    %v475 = vadd.f32 0.0, %v474
    %v476 = vpop.f32.mrb[0].mxu0
    %v477 = vpop.f32.mrb[0].mxu0
    %v478 = vpop.f32.mrb[0].mxu0
    %479 = vdwg.mxu0
    %v480 = vadd.f32 %v147, %v434
    %v481 = vmul.f32 %v480, 0.5
    %v482 = vtanh.pop %v481
    %v483 = vmul.f32 %v482, 0.5
    %v484 = vadd.f32 %v483, 0.5
    %v485 = vadd.f32 %v149, %v436
    %v486 = vmul.f32 %v485, 0.5
    %v487 = vtanh.pop %v486
    %v488 = vmul.f32 %v487, 0.5
    %v489 = vadd.f32 %v488, 0.5
    %v490 = vadd.f32 %v475, %v269
    %v491 = vmul.f32 %v484, %v490
    %v492 = vadd.f32 %v224, %v491
    %v493 = vtanh.pop %v492
    %v494 = vsub.f32 0.0, %v493
    %v495 = vmul.f32 %v489, %v494
    %v496 = vadd.f32 %v493, %v495
    %v497 = vpack.c.bf16 %v496, %v496
    %498 = vmatprep.subr.bf16.mxu0 %v352
    %499 = vmatpush1.bf16.msra.mxu0 %v351
    %500 = vmatprep.subr.bf16.mxu0 %v355
    %501 = vmatpush1.bf16.msra.mxu0 %v354
    %502 = vmatprep.subr.bf16.mxu0 %v358
    %503 = vmatpush1.bf16.msra.mxu0 %v357
    %504 = vmatprep.subr.bf16.mxu0 %v361
    %505 = vmatpush1.bf16.msra.mxu0 %v360
    %506 = vmatprep.subr.bf16.mxu0 %v364
    %507 = vmatpush1.bf16.msra.mxu0 %v363
    %508 = vmatprep.subr.bf16.mxu0 %v367
    %509 = vmatpush1.bf16.msra.mxu0 %v366
    %510 = vmatprep.subr.bf16.mxu0 %v370
    %511 = vmatpush1.bf16.msra.mxu0 %v369
    %512 = vmatprep.subr.bf16.mxu0 %v373
    %513 = vmatpush1.bf16.msra.mxu0 %v372
    %514 = vmatprep.subr.bf16.mxu0 0
    %515 = vmatpush1.bf16.msra.mxu0 0
    %516 = vmatprep.subr.bf16.mxu0 0
    %517 = vmatpush1.bf16.msra.mxu0 0
    %518 = vmatprep.subr.bf16.mxu0 0
    %519 = vmatpush1.bf16.msra.mxu0 0
    %520 = vmatprep.subr.bf16.mxu0 0
    %521 = vmatpush1.bf16.msra.mxu0 0
    %522 = vmatprep.subr.bf16.mxu0 0
    %523 = vmatpush1.bf16.msra.mxu0 0
    %524 = vmatprep.subr.bf16.mxu0 0
    %525 = vmatpush1.bf16.msra.mxu0 0
    %526 = vmatprep.subr.bf16.mxu0 0
    %527 = vmatpush1.bf16.msra.mxu0 0
    %528 = vmatprep.subr.bf16.mxu0 0
    %529 = vmatpush1.bf16.msra.mxu0 0
    %530 = vmatprep.mubr.bf16.mxu0 0
    %531 = vmatmul.mubr.bf16.gmra.mrb[0].mxu0 %v497
    %v532 = vpop.f32.mrb[0].mxu0
    %v533 = vadd.f32 0.0, %v532
    %v534 = vpop.f32.mrb[0].mxu0
    %v535 = vadd.f32 0.0, %v534
    %v536 = vpop.f32.mrb[0].mxu0
    %v537 = vpop.f32.mrb[0].mxu0
    %538 = vdwg.mxu0
    %539 = vmatprep.subr.bf16.mxu0 0
    %540 = vmatpush1.bf16.msra.mxu0 %v353
    %541 = vmatprep.subr.bf16.mxu0 0
    %542 = vmatpush1.bf16.msra.mxu0 %v356
    %543 = vmatprep.subr.bf16.mxu0 0
    %544 = vmatpush1.bf16.msra.mxu0 %v359
    %545 = vmatprep.subr.bf16.mxu0 0
    %546 = vmatpush1.bf16.msra.mxu0 %v362
    %547 = vmatprep.subr.bf16.mxu0 0
    %548 = vmatpush1.bf16.msra.mxu0 %v365
    %549 = vmatprep.subr.bf16.mxu0 0
    %550 = vmatpush1.bf16.msra.mxu0 %v368
    %551 = vmatprep.subr.bf16.mxu0 0
    %552 = vmatpush1.bf16.msra.mxu0 %v371
    %553 = vmatprep.subr.bf16.mxu0 0
    %554 = vmatpush1.bf16.msra.mxu0 %v374
    %555 = vmatprep.subr.bf16.mxu0 0
    %556 = vmatpush1.bf16.msra.mxu0 0
    %557 = vmatprep.subr.bf16.mxu0 0
    %558 = vmatpush1.bf16.msra.mxu0 0
    %559 = vmatprep.subr.bf16.mxu0 0
    %560 = vmatpush1.bf16.msra.mxu0 0
    %561 = vmatprep.subr.bf16.mxu0 0
    %562 = vmatpush1.bf16.msra.mxu0 0
    %563 = vmatprep.subr.bf16.mxu0 0
    %564 = vmatpush1.bf16.msra.mxu0 0
    %565 = vmatprep.subr.bf16.mxu0 0
    %566 = vmatpush1.bf16.msra.mxu0 0
    %567 = vmatprep.subr.bf16.mxu0 0
    %568 = vmatpush1.bf16.msra.mxu0 0
    %569 = vmatprep.subr.bf16.mxu0 0
    %570 = vmatpush1.bf16.msra.mxu0 0
    %571 = vmatprep.mubr.bf16.mxu0 0
    %572 = vmatmul.mubr.bf16.gmra.mrb[0].mxu0 %v497
    %v573 = vpop.f32.mrb[0].mxu0
    %v574 = vadd.f32 0.0, %v573
    %v575 = vpop.f32.mrb[0].mxu0
    %v576 = vpop.f32.mrb[0].mxu0
    %v577 = vpop.f32.mrb[0].mxu0
    %578 = vdwg.mxu0
    %v580 = vrot.slane %v533, 6
    %v582 = vadd.f32 %v147, %v580
    %v583 = vmul.f32 %v582, 0.5
    %v584 = vtanh.pop %v583
    %v585 = vmul.f32 %v584, 0.5
    %v586 = vadd.f32 %v585, 0.5
    %v588 = vrot.slane %v535, 6
    %v590 = vadd.f32 %v149, %v588
    %v591 = vmul.f32 %v590, 0.5
    %v592 = vtanh.pop %v591
    %v593 = vmul.f32 %v592, 0.5
    %v594 = vadd.f32 %v593, 0.5
    %v595 = vadd.f32 %v574, %v269
    %v597 = vrot.slane %v595, 6
    %v599 = vmul.f32 %v586, %v597
    %v600 = vadd.f32 %v224, %v599
    %v601 = vtanh.pop %v600
    %v603 = vrot.slane %v601, 2
    %v605 = vsub.f32 %v496, %v603
    %v607 = vrot.slane %v605, 6
    %v609 = vmul.f32 %v594, %v607
    %v610 = vadd.f32 %v601, %v609
    %v611 = vpack.c.bf16 %v610, %v610
    %v613 = vrot.slane %v611, 1
    %615 = vmatprep.subr.bf16.mxu0 %v352
    %616 = vmatpush1.bf16.msra.mxu0 %v351
    %617 = vmatprep.subr.bf16.mxu0 %v355
    %618 = vmatpush1.bf16.msra.mxu0 %v354
    %619 = vmatprep.subr.bf16.mxu0 %v358
    %620 = vmatpush1.bf16.msra.mxu0 %v357
    %621 = vmatprep.subr.bf16.mxu0 %v361
    %622 = vmatpush1.bf16.msra.mxu0 %v360
    %623 = vmatprep.subr.bf16.mxu0 %v364
    %624 = vmatpush1.bf16.msra.mxu0 %v363
    %625 = vmatprep.subr.bf16.mxu0 %v367
    %626 = vmatpush1.bf16.msra.mxu0 %v366
    %627 = vmatprep.subr.bf16.mxu0 %v370
    %628 = vmatpush1.bf16.msra.mxu0 %v369
    %629 = vmatprep.subr.bf16.mxu0 %v373
    %630 = vmatpush1.bf16.msra.mxu0 %v372
    %631 = vmatprep.subr.bf16.mxu0 0
    %632 = vmatpush1.bf16.msra.mxu0 0
    %633 = vmatprep.subr.bf16.mxu0 0
    %634 = vmatpush1.bf16.msra.mxu0 0
    %635 = vmatprep.subr.bf16.mxu0 0
    %636 = vmatpush1.bf16.msra.mxu0 0
    %637 = vmatprep.subr.bf16.mxu0 0
    %638 = vmatpush1.bf16.msra.mxu0 0
    %639 = vmatprep.subr.bf16.mxu0 0
    %640 = vmatpush1.bf16.msra.mxu0 0
    %641 = vmatprep.subr.bf16.mxu0 0
    %642 = vmatpush1.bf16.msra.mxu0 0
    %643 = vmatprep.subr.bf16.mxu0 0
    %644 = vmatpush1.bf16.msra.mxu0 0
    %645 = vmatprep.subr.bf16.mxu0 0
    %646 = vmatpush1.bf16.msra.mxu0 0
    %647 = vmatprep.mubr.bf16.mxu0 0
    %648 = vmatmul.mubr.bf16.gmra.mrb[0].mxu0 %v613
    %v649 = vpop.f32.mrb[0].mxu0
    %v650 = vadd.f32 0.0, %v649
    %v651 = vpop.f32.mrb[0].mxu0
    %v652 = vadd.f32 0.0, %v651
    %v653 = vpop.f32.mrb[0].mxu0
    %v654 = vpop.f32.mrb[0].mxu0
    %655 = vdwg.mxu0
    %656 = vmatprep.subr.bf16.mxu0 0
    %657 = vmatpush1.bf16.msra.mxu0 %v353
    %658 = vmatprep.subr.bf16.mxu0 0
    %659 = vmatpush1.bf16.msra.mxu0 %v356
    %660 = vmatprep.subr.bf16.mxu0 0
    %661 = vmatpush1.bf16.msra.mxu0 %v359
    %662 = vmatprep.subr.bf16.mxu0 0
    %663 = vmatpush1.bf16.msra.mxu0 %v362
    %664 = vmatprep.subr.bf16.mxu0 0
    %665 = vmatpush1.bf16.msra.mxu0 %v365
    %666 = vmatprep.subr.bf16.mxu0 0
    %667 = vmatpush1.bf16.msra.mxu0 %v368
    %668 = vmatprep.subr.bf16.mxu0 0
    %669 = vmatpush1.bf16.msra.mxu0 %v371
    %670 = vmatprep.subr.bf16.mxu0 0
    %671 = vmatpush1.bf16.msra.mxu0 %v374
    %672 = vmatprep.subr.bf16.mxu0 0
    %673 = vmatpush1.bf16.msra.mxu0 0
    %674 = vmatprep.subr.bf16.mxu0 0
    %675 = vmatpush1.bf16.msra.mxu0 0
    %676 = vmatprep.subr.bf16.mxu0 0
    %677 = vmatpush1.bf16.msra.mxu0 0
    %678 = vmatprep.subr.bf16.mxu0 0
    %679 = vmatpush1.bf16.msra.mxu0 0
    %680 = vmatprep.subr.bf16.mxu0 0
    %681 = vmatpush1.bf16.msra.mxu0 0
    %682 = vmatprep.subr.bf16.mxu0 0
    %683 = vmatpush1.bf16.msra.mxu0 0
    %684 = vmatprep.subr.bf16.mxu0 0
    %685 = vmatpush1.bf16.msra.mxu0 0
    %686 = vmatprep.subr.bf16.mxu0 0
    %687 = vmatpush1.bf16.msra.mxu0 0
    %688 = vmatprep.mubr.bf16.mxu0 0
    %689 = vmatmul.mubr.bf16.gmra.mrb[0].mxu0 %v613
    %v690 = vpop.f32.mrb[0].mxu0
    %v691 = vadd.f32 0.0, %v690
    %v692 = vpop.f32.mrb[0].mxu0
    %v693 = vpop.f32.mrb[0].mxu0
    %v694 = vpop.f32.mrb[0].mxu0
    %695 = vdwg.mxu0
    %v697 = vrot.slane %v650, 4
    %v699 = vadd.f32 %v147, %v697
    %v700 = vmul.f32 %v699, 0.5
    %v701 = vtanh.pop %v700
    %v702 = vmul.f32 %v701, 0.5
    %v703 = vadd.f32 %v702, 0.5
    %v705 = vrot.slane %v652, 4
    %v707 = vadd.f32 %v149, %v705
    %v708 = vmul.f32 %v707, 0.5
    %v709 = vtanh.pop %v708
    %v710 = vmul.f32 %v709, 0.5
    %v711 = vadd.f32 %v710, 0.5
    %v712 = vadd.f32 %v691, %v269
    %v714 = vrot.slane %v712, 4
    %v716 = vmul.f32 %v703, %v714
    %v717 = vadd.f32 %v224, %v716
    %v718 = vtanh.pop %v717
    %v720 = vrot.slane %v718, 2
    %v722 = vsub.f32 %v610, %v720
    %v724 = vrot.slane %v722, 6
    %v726 = vmul.f32 %v711, %v724
    %v727 = vadd.f32 %v718, %v726
    %v728 = vpack.c.bf16 %v727, %v727
    %v730 = vrot.slane %v728, 2
    %732 = vmatprep.subr.bf16.mxu0 %v352
    %733 = vmatpush1.bf16.msra.mxu0 %v351
    %734 = vmatprep.subr.bf16.mxu0 %v355
    %735 = vmatpush1.bf16.msra.mxu0 %v354
    %736 = vmatprep.subr.bf16.mxu0 %v358
    %737 = vmatpush1.bf16.msra.mxu0 %v357
    %738 = vmatprep.subr.bf16.mxu0 %v361
    %739 = vmatpush1.bf16.msra.mxu0 %v360
    %740 = vmatprep.subr.bf16.mxu0 %v364
    %741 = vmatpush1.bf16.msra.mxu0 %v363
    %742 = vmatprep.subr.bf16.mxu0 %v367
    %743 = vmatpush1.bf16.msra.mxu0 %v366
    %744 = vmatprep.subr.bf16.mxu0 %v370
    %745 = vmatpush1.bf16.msra.mxu0 %v369
    %746 = vmatprep.subr.bf16.mxu0 %v373
    %747 = vmatpush1.bf16.msra.mxu0 %v372
    %748 = vmatprep.subr.bf16.mxu0 0
    %749 = vmatpush1.bf16.msra.mxu0 0
    %750 = vmatprep.subr.bf16.mxu0 0
    %751 = vmatpush1.bf16.msra.mxu0 0
    %752 = vmatprep.subr.bf16.mxu0 0
    %753 = vmatpush1.bf16.msra.mxu0 0
    %754 = vmatprep.subr.bf16.mxu0 0
    %755 = vmatpush1.bf16.msra.mxu0 0
    %756 = vmatprep.subr.bf16.mxu0 0
    %757 = vmatpush1.bf16.msra.mxu0 0
    %758 = vmatprep.subr.bf16.mxu0 0
    %759 = vmatpush1.bf16.msra.mxu0 0
    %760 = vmatprep.subr.bf16.mxu0 0
    %761 = vmatpush1.bf16.msra.mxu0 0
    %762 = vmatprep.subr.bf16.mxu0 0
    %763 = vmatpush1.bf16.msra.mxu0 0
    %764 = vmatprep.mubr.bf16.mxu0 0
    %765 = vmatmul.mubr.bf16.gmra.mrb[0].mxu0 %v730
    %v766 = vpop.f32.mrb[0].mxu0
    %v767 = vadd.f32 0.0, %v766
    %v768 = vpop.f32.mrb[0].mxu0
    %v769 = vadd.f32 0.0, %v768
    %v770 = vpop.f32.mrb[0].mxu0
    %v771 = vpop.f32.mrb[0].mxu0
    %772 = vdwg.mxu0
    %773 = vmatprep.subr.bf16.mxu0 0
    %774 = vmatpush1.bf16.msra.mxu0 %v353
    %775 = vmatprep.subr.bf16.mxu0 0
    %776 = vmatpush1.bf16.msra.mxu0 %v356
    %777 = vmatprep.subr.bf16.mxu0 0
    %778 = vmatpush1.bf16.msra.mxu0 %v359
    %779 = vmatprep.subr.bf16.mxu0 0
    %780 = vmatpush1.bf16.msra.mxu0 %v362
    %781 = vmatprep.subr.bf16.mxu0 0
    %782 = vmatpush1.bf16.msra.mxu0 %v365
    %783 = vmatprep.subr.bf16.mxu0 0
    %784 = vmatpush1.bf16.msra.mxu0 %v368
    %785 = vmatprep.subr.bf16.mxu0 0
    %786 = vmatpush1.bf16.msra.mxu0 %v371
    %787 = vmatprep.subr.bf16.mxu0 0
    %788 = vmatpush1.bf16.msra.mxu0 %v374
    %789 = vmatprep.subr.bf16.mxu0 0
    %790 = vmatpush1.bf16.msra.mxu0 0
    %791 = vmatprep.subr.bf16.mxu0 0
    %792 = vmatpush1.bf16.msra.mxu0 0
    %793 = vmatprep.subr.bf16.mxu0 0
    %794 = vmatpush1.bf16.msra.mxu0 0
    %795 = vmatprep.subr.bf16.mxu0 0
    %796 = vmatpush1.bf16.msra.mxu0 0
    %797 = vmatprep.subr.bf16.mxu0 0
    %798 = vmatpush1.bf16.msra.mxu0 0
    %799 = vmatprep.subr.bf16.mxu0 0
    %800 = vmatpush1.bf16.msra.mxu0 0
    %801 = vmatprep.subr.bf16.mxu0 0
    %802 = vmatpush1.bf16.msra.mxu0 0
    %803 = vmatprep.subr.bf16.mxu0 0
    %804 = vmatpush1.bf16.msra.mxu0 0
    %805 = vmatprep.mubr.bf16.mxu0 0
    %806 = vmatmul.mubr.bf16.gmra.mrb[0].mxu0 %v730
    %v807 = vpop.f32.mrb[0].mxu0
    %v808 = vadd.f32 0.0, %v807
    %v809 = vpop.f32.mrb[0].mxu0
    %v810 = vpop.f32.mrb[0].mxu0
    %v811 = vpop.f32.mrb[0].mxu0
    %812 = vdwg.mxu0
    %v814 = vrot.slane %v767, 2
    %v816 = vadd.f32 %v147, %v814
    %v817 = vmul.f32 %v816, 0.5
    %v818 = vtanh.pop %v817
    %v819 = vmul.f32 %v818, 0.5
    %v820 = vadd.f32 %v819, 0.5
    %v822 = vrot.slane %v769, 2
    %v824 = vadd.f32 %v149, %v822
    %v825 = vmul.f32 %v824, 0.5
    %v826 = vtanh.pop %v825
    %v827 = vmul.f32 %v826, 0.5
    %v828 = vadd.f32 %v827, 0.5
    %v829 = vadd.f32 %v808, %v269
    %v831 = vrot.slane %v829, 2
    %v833 = vmul.f32 %v820, %v831
    %v834 = vadd.f32 %v224, %v833
    %v835 = vtanh.pop %v834
    %v837 = vrot.slane %v835, 2
    %v839 = vsub.f32 %v727, %v837
    %v841 = vrot.slane %v839, 6
    %v843 = vmul.f32 %v828, %v841
    %v844 = vadd.f32 %v835, %v843
    %v845 = vpack.c.bf16 %v844, %v844
    %v847 = vrot.slane %v845, 3
    %849 = vmatprep.subr.bf16.mxu0 %v352
    %850 = vmatpush1.bf16.msra.mxu0 %v351
    %851 = vmatprep.subr.bf16.mxu0 %v355
    %852 = vmatpush1.bf16.msra.mxu0 %v354
    %853 = vmatprep.subr.bf16.mxu0 %v358
    %854 = vmatpush1.bf16.msra.mxu0 %v357
    %855 = vmatprep.subr.bf16.mxu0 %v361
    %856 = vmatpush1.bf16.msra.mxu0 %v360
    %857 = vmatprep.subr.bf16.mxu0 %v364
    %858 = vmatpush1.bf16.msra.mxu0 %v363
    %859 = vmatprep.subr.bf16.mxu0 %v367
    %860 = vmatpush1.bf16.msra.mxu0 %v366
    %861 = vmatprep.subr.bf16.mxu0 %v370
    %862 = vmatpush1.bf16.msra.mxu0 %v369
    %863 = vmatprep.subr.bf16.mxu0 %v373
    %864 = vmatpush1.bf16.msra.mxu0 %v372
    %865 = vmatprep.subr.bf16.mxu0 0
    %866 = vmatpush1.bf16.msra.mxu0 0
    %867 = vmatprep.subr.bf16.mxu0 0
    %868 = vmatpush1.bf16.msra.mxu0 0
    %869 = vmatprep.subr.bf16.mxu0 0
    %870 = vmatpush1.bf16.msra.mxu0 0
    %871 = vmatprep.subr.bf16.mxu0 0
    %872 = vmatpush1.bf16.msra.mxu0 0
    %873 = vmatprep.subr.bf16.mxu0 0
    %874 = vmatpush1.bf16.msra.mxu0 0
    %875 = vmatprep.subr.bf16.mxu0 0
    %876 = vmatpush1.bf16.msra.mxu0 0
    %877 = vmatprep.subr.bf16.mxu0 0
    %878 = vmatpush1.bf16.msra.mxu0 0
    %879 = vmatprep.subr.bf16.mxu0 0
    %880 = vmatpush1.bf16.msra.mxu0 0
    %881 = vmatprep.mubr.bf16.mxu0 0
    %882 = vmatmul.mubr.bf16.gmra.mrb[0].mxu0 %v847
    %v883 = vpop.f32.mrb[0].mxu0
    %v884 = vadd.f32 0.0, %v883
    %v885 = vpop.f32.mrb[0].mxu0
    %v886 = vadd.f32 0.0, %v885
    %v887 = vpop.f32.mrb[0].mxu0
    %v888 = vpop.f32.mrb[0].mxu0
    %889 = vdwg.mxu0
    %890 = vmatprep.subr.bf16.mxu0 0
    %891 = vmatpush1.bf16.msra.mxu0 %v353
    %892 = vmatprep.subr.bf16.mxu0 0
    %893 = vmatpush1.bf16.msra.mxu0 %v356
    %894 = vmatprep.subr.bf16.mxu0 0
    %895 = vmatpush1.bf16.msra.mxu0 %v359
    %896 = vmatprep.subr.bf16.mxu0 0
    %897 = vmatpush1.bf16.msra.mxu0 %v362
    %898 = vmatprep.subr.bf16.mxu0 0
    %899 = vmatpush1.bf16.msra.mxu0 %v365
    %900 = vmatprep.subr.bf16.mxu0 0
    %901 = vmatpush1.bf16.msra.mxu0 %v368
    %902 = vmatprep.subr.bf16.mxu0 0
    %903 = vmatpush1.bf16.msra.mxu0 %v371
    %904 = vmatprep.subr.bf16.mxu0 0
    %905 = vmatpush1.bf16.msra.mxu0 %v374
    %906 = vmatprep.subr.bf16.mxu0 0
    %907 = vmatpush1.bf16.msra.mxu0 0
    %908 = vmatprep.subr.bf16.mxu0 0
    %909 = vmatpush1.bf16.msra.mxu0 0
    %910 = vmatprep.subr.bf16.mxu0 0
    %911 = vmatpush1.bf16.msra.mxu0 0
    %912 = vmatprep.subr.bf16.mxu0 0
    %913 = vmatpush1.bf16.msra.mxu0 0
    %914 = vmatprep.subr.bf16.mxu0 0
    %915 = vmatpush1.bf16.msra.mxu0 0
    %916 = vmatprep.subr.bf16.mxu0 0
    %917 = vmatpush1.bf16.msra.mxu0 0
    %918 = vmatprep.subr.bf16.mxu0 0
    %919 = vmatpush1.bf16.msra.mxu0 0
    %920 = vmatprep.subr.bf16.mxu0 0
    %921 = vmatpush1.bf16.msra.mxu0 0
    %922 = vmatprep.mubr.bf16.mxu0 0
    %923 = vmatmul.mubr.bf16.gmra.mrb[0].mxu0 %v847
    %v924 = vpop.f32.mrb[0].mxu0
    %v925 = vadd.f32 0.0, %v924
    %v926 = vpop.f32.mrb[0].mxu0
    %v927 = vpop.f32.mrb[0].mxu0
    %v928 = vpop.f32.mrb[0].mxu0
    %929 = vdwg.mxu0
    %v930 = vadd.f32 %v153, %v884
    %v931 = vmul.f32 %v930, 0.5
    %v932 = vtanh.pop %v931
    %v933 = vmul.f32 %v932, 0.5
    %v934 = vadd.f32 %v933, 0.5
    %v935 = vadd.f32 %v155, %v886
    %v936 = vmul.f32 %v935, 0.5
    %v937 = vtanh.pop %v936
    %v938 = vmul.f32 %v937, 0.5
    %v939 = vadd.f32 %v938, 0.5
    %v940 = vadd.f32 %v925, %v269
    %v941 = vmul.f32 %v934, %v940
    %v942 = vadd.f32 %v229, %v941
    %v943 = vtanh.pop %v942
    %v945 = vrot.slane %v943, 2
    %v947 = vsub.f32 %v844, %v945
    %v949 = vrot.slane %v947, 6
    %v951 = vmul.f32 %v939, %v949
    %v952 = vadd.f32 %v943, %v951
    %v953 = vpack.c.bf16 %v952, %v952
    %954 = vmatprep.subr.bf16.mxu0 %v352
    %955 = vmatpush1.bf16.msra.mxu0 %v351
    %956 = vmatprep.subr.bf16.mxu0 %v355
    %957 = vmatpush1.bf16.msra.mxu0 %v354
    %958 = vmatprep.subr.bf16.mxu0 %v358
    %959 = vmatpush1.bf16.msra.mxu0 %v357
    %960 = vmatprep.subr.bf16.mxu0 %v361
    %961 = vmatpush1.bf16.msra.mxu0 %v360
    %962 = vmatprep.subr.bf16.mxu0 %v364
    %963 = vmatpush1.bf16.msra.mxu0 %v363
    %964 = vmatprep.subr.bf16.mxu0 %v367
    %965 = vmatpush1.bf16.msra.mxu0 %v366
    %966 = vmatprep.subr.bf16.mxu0 %v370
    %967 = vmatpush1.bf16.msra.mxu0 %v369
    %968 = vmatprep.subr.bf16.mxu0 %v373
    %969 = vmatpush1.bf16.msra.mxu0 %v372
    %970 = vmatprep.subr.bf16.mxu0 0
    %971 = vmatpush1.bf16.msra.mxu0 0
    %972 = vmatprep.subr.bf16.mxu0 0
    %973 = vmatpush1.bf16.msra.mxu0 0
    %974 = vmatprep.subr.bf16.mxu0 0
    %975 = vmatpush1.bf16.msra.mxu0 0
    %976 = vmatprep.subr.bf16.mxu0 0
    %977 = vmatpush1.bf16.msra.mxu0 0
    %978 = vmatprep.subr.bf16.mxu0 0
    %979 = vmatpush1.bf16.msra.mxu0 0
    %980 = vmatprep.subr.bf16.mxu0 0
    %981 = vmatpush1.bf16.msra.mxu0 0
    %982 = vmatprep.subr.bf16.mxu0 0
    %983 = vmatpush1.bf16.msra.mxu0 0
    %984 = vmatprep.subr.bf16.mxu0 0
    %985 = vmatpush1.bf16.msra.mxu0 0
    %986 = vmatprep.mubr.bf16.mxu0 0
    %987 = vmatmul.mubr.bf16.gmra.mrb[0].mxu0 %v953
    %v988 = vpop.f32.mrb[0].mxu0
    %v989 = vadd.f32 0.0, %v988
    %v990 = vpop.f32.mrb[0].mxu0
    %v991 = vadd.f32 0.0, %v990
    %v992 = vpop.f32.mrb[0].mxu0
    %v993 = vpop.f32.mrb[0].mxu0
    %994 = vdwg.mxu0
    %995 = vmatprep.subr.bf16.mxu0 0
    %996 = vmatpush1.bf16.msra.mxu0 %v353
    %997 = vmatprep.subr.bf16.mxu0 0
    %998 = vmatpush1.bf16.msra.mxu0 %v356
    %999 = vmatprep.subr.bf16.mxu0 0
    %1000 = vmatpush1.bf16.msra.mxu0 %v359
    %1001 = vmatprep.subr.bf16.mxu0 0
    %1002 = vmatpush1.bf16.msra.mxu0 %v362
    %1003 = vmatprep.subr.bf16.mxu0 0
    %1004 = vmatpush1.bf16.msra.mxu0 %v365
    %1005 = vmatprep.subr.bf16.mxu0 0
    %1006 = vmatpush1.bf16.msra.mxu0 %v368
    %1007 = vmatprep.subr.bf16.mxu0 0
    %1008 = vmatpush1.bf16.msra.mxu0 %v371
    %1009 = vmatprep.subr.bf16.mxu0 0
    %1010 = vmatpush1.bf16.msra.mxu0 %v374
    %1011 = vmatprep.subr.bf16.mxu0 0
    %1012 = vmatpush1.bf16.msra.mxu0 0
    %1013 = vmatprep.subr.bf16.mxu0 0
    %1014 = vmatpush1.bf16.msra.mxu0 0
    %1015 = vmatprep.subr.bf16.mxu0 0
    %1016 = vmatpush1.bf16.msra.mxu0 0
    %1017 = vmatprep.subr.bf16.mxu0 0
    %1018 = vmatpush1.bf16.msra.mxu0 0
    %1019 = vmatprep.subr.bf16.mxu0 0
    %1020 = vmatpush1.bf16.msra.mxu0 0
    %1021 = vmatprep.subr.bf16.mxu0 0
    %1022 = vmatpush1.bf16.msra.mxu0 0
    %1023 = vmatprep.subr.bf16.mxu0 0
    %1024 = vmatpush1.bf16.msra.mxu0 0
    %1025 = vmatprep.subr.bf16.mxu0 0
    %1026 = vmatpush1.bf16.msra.mxu0 0
    %1027 = vmatprep.mubr.bf16.mxu0 0
    %1028 = vmatmul.mubr.bf16.gmra.mrb[0].mxu0 %v953
    %v1029 = vpop.f32.mrb[0].mxu0
    %v1030 = vadd.f32 0.0, %v1029
    %v1031 = vpop.f32.mrb[0].mxu0
    %v1032 = vpop.f32.mrb[0].mxu0
    %v1033 = vpop.f32.mrb[0].mxu0
    %1034 = vdwg.mxu0
    %v1036 = vrot.slane %v989, 6
    %v1038 = vadd.f32 %v153, %v1036
    %v1039 = vmul.f32 %v1038, 0.5
    %v1040 = vtanh.pop %v1039
    %v1041 = vmul.f32 %v1040, 0.5
    %v1042 = vadd.f32 %v1041, 0.5
    %v1044 = vrot.slane %v991, 6
    %v1046 = vadd.f32 %v155, %v1044
    %v1047 = vmul.f32 %v1046, 0.5
    %v1048 = vtanh.pop %v1047
    %v1049 = vmul.f32 %v1048, 0.5
    %v1050 = vadd.f32 %v1049, 0.5
    %v1051 = vadd.f32 %v1030, %v269
    %v1053 = vrot.slane %v1051, 6
    %v1055 = vmul.f32 %v1042, %v1053
    %v1056 = vadd.f32 %v229, %v1055
    %v1057 = vtanh.pop %v1056
    %v1059 = vrot.slane %v1057, 2
    %v1061 = vsub.f32 %v952, %v1059
    %v1063 = vrot.slane %v1061, 6
    %v1065 = vmul.f32 %v1050, %v1063
    %v1066 = vadd.f32 %v1057, %v1065
    %v1067 = vpack.c.bf16 %v1066, %v1066
    %v1069 = vrot.slane %v1067, 1
    %1071 = vmatprep.subr.bf16.mxu0 %v352
    %1072 = vmatpush1.bf16.msra.mxu0 %v351
    %1073 = vmatprep.subr.bf16.mxu0 %v355
    %1074 = vmatpush1.bf16.msra.mxu0 %v354
    %1075 = vmatprep.subr.bf16.mxu0 %v358
    %1076 = vmatpush1.bf16.msra.mxu0 %v357
    %1077 = vmatprep.subr.bf16.mxu0 %v361
    %1078 = vmatpush1.bf16.msra.mxu0 %v360
    %1079 = vmatprep.subr.bf16.mxu0 %v364
    %1080 = vmatpush1.bf16.msra.mxu0 %v363
    %1081 = vmatprep.subr.bf16.mxu0 %v367
    %1082 = vmatpush1.bf16.msra.mxu0 %v366
    %1083 = vmatprep.subr.bf16.mxu0 %v370
    %1084 = vmatpush1.bf16.msra.mxu0 %v369
    %1085 = vmatprep.subr.bf16.mxu0 %v373
    %1086 = vmatpush1.bf16.msra.mxu0 %v372
    %1087 = vmatprep.subr.bf16.mxu0 0
    %1088 = vmatpush1.bf16.msra.mxu0 0
    %1089 = vmatprep.subr.bf16.mxu0 0
    %1090 = vmatpush1.bf16.msra.mxu0 0
    %1091 = vmatprep.subr.bf16.mxu0 0
    %1092 = vmatpush1.bf16.msra.mxu0 0
    %1093 = vmatprep.subr.bf16.mxu0 0
    %1094 = vmatpush1.bf16.msra.mxu0 0
    %1095 = vmatprep.subr.bf16.mxu0 0
    %1096 = vmatpush1.bf16.msra.mxu0 0
    %1097 = vmatprep.subr.bf16.mxu0 0
    %1098 = vmatpush1.bf16.msra.mxu0 0
    %1099 = vmatprep.subr.bf16.mxu0 0
    %1100 = vmatpush1.bf16.msra.mxu0 0
    %1101 = vmatprep.subr.bf16.mxu0 0
    %1102 = vmatpush1.bf16.msra.mxu0 0
    %1103 = vmatprep.mubr.bf16.mxu0 0
    %1104 = vmatmul.mubr.bf16.gmra.mrb[0].mxu0 %v1069
    %v1105 = vpop.f32.mrb[0].mxu0
    %v1106 = vadd.f32 0.0, %v1105
    %v1107 = vpop.f32.mrb[0].mxu0
    %v1108 = vadd.f32 0.0, %v1107
    %v1109 = vpop.f32.mrb[0].mxu0
    %v1110 = vpop.f32.mrb[0].mxu0
    %1111 = vdwg.mxu0
    %1112 = vmatprep.subr.bf16.mxu0 0
    %1113 = vmatpush1.bf16.msra.mxu0 %v353
    %1114 = vmatprep.subr.bf16.mxu0 0
    %1115 = vmatpush1.bf16.msra.mxu0 %v356
    %1116 = vmatprep.subr.bf16.mxu0 0
    %1117 = vmatpush1.bf16.msra.mxu0 %v359
    %1118 = vmatprep.subr.bf16.mxu0 0
    %1119 = vmatpush1.bf16.msra.mxu0 %v362
    %1120 = vmatprep.subr.bf16.mxu0 0
    %1121 = vmatpush1.bf16.msra.mxu0 %v365
    %1122 = vmatprep.subr.bf16.mxu0 0
    %1123 = vmatpush1.bf16.msra.mxu0 %v368
    %1124 = vmatprep.subr.bf16.mxu0 0
    %1125 = vmatpush1.bf16.msra.mxu0 %v371
    %1126 = vmatprep.subr.bf16.mxu0 0
    %1127 = vmatpush1.bf16.msra.mxu0 %v374
    %1128 = vmatprep.subr.bf16.mxu0 0
    %1129 = vmatpush1.bf16.msra.mxu0 0
    %1130 = vmatprep.subr.bf16.mxu0 0
    %1131 = vmatpush1.bf16.msra.mxu0 0
    %1132 = vmatprep.subr.bf16.mxu0 0
    %1133 = vmatpush1.bf16.msra.mxu0 0
    %1134 = vmatprep.subr.bf16.mxu0 0
    %1135 = vmatpush1.bf16.msra.mxu0 0
    %1136 = vmatprep.subr.bf16.mxu0 0
    %1137 = vmatpush1.bf16.msra.mxu0 0
    %1138 = vmatprep.subr.bf16.mxu0 0
    %1139 = vmatpush1.bf16.msra.mxu0 0
    %1140 = vmatprep.subr.bf16.mxu0 0
    %1141 = vmatpush1.bf16.msra.mxu0 0
    %1142 = vmatprep.subr.bf16.mxu0 0
    %1143 = vmatpush1.bf16.msra.mxu0 0
    %1144 = vmatprep.mubr.bf16.mxu0 0
    %1145 = vmatmul.mubr.bf16.gmra.mrb[0].mxu0 %v1069
    %v1146 = vpop.f32.mrb[0].mxu0
    %v1147 = vadd.f32 0.0, %v1146
    %v1148 = vpop.f32.mrb[0].mxu0
    %v1149 = vpop.f32.mrb[0].mxu0
    %v1150 = vpop.f32.mrb[0].mxu0
    %1151 = vdwg.mxu0
    %v1153 = vrot.slane %v1106, 4
    %v1155 = vadd.f32 %v153, %v1153
    %v1156 = vmul.f32 %v1155, 0.5
    %v1157 = vtanh.pop %v1156
    %v1158 = vmul.f32 %v1157, 0.5
    %v1159 = vadd.f32 %v1158, 0.5
    %v1161 = vrot.slane %v1108, 4
    %v1163 = vadd.f32 %v155, %v1161
    %v1164 = vmul.f32 %v1163, 0.5
    %v1165 = vtanh.pop %v1164
    %v1166 = vmul.f32 %v1165, 0.5
    %v1167 = vadd.f32 %v1166, 0.5
    %v1168 = vadd.f32 %v1147, %v269
    %v1170 = vrot.slane %v1168, 4
    %v1172 = vmul.f32 %v1159, %v1170
    %v1173 = vadd.f32 %v229, %v1172
    %v1174 = vtanh.pop %v1173
    %v1176 = vrot.slane %v1174, 2
    %v1178 = vsub.f32 %v1066, %v1176
    %v1180 = vrot.slane %v1178, 6
    %v1182 = vmul.f32 %v1167, %v1180
    %v1183 = vadd.f32 %v1174, %v1182
    %v1184 = vpack.c.bf16 %v1183, %v1183
    %v1186 = vrot.slane %v1184, 2
    %1188 = vmatprep.subr.bf16.mxu0 %v352
    %1189 = vmatpush1.bf16.msra.mxu0 %v351
    %1190 = vmatprep.subr.bf16.mxu0 %v355
    %1191 = vmatpush1.bf16.msra.mxu0 %v354
    %1192 = vmatprep.subr.bf16.mxu0 %v358
    %1193 = vmatpush1.bf16.msra.mxu0 %v357
    %1194 = vmatprep.subr.bf16.mxu0 %v361
    %1195 = vmatpush1.bf16.msra.mxu0 %v360
    %1196 = vmatprep.subr.bf16.mxu0 %v364
    %1197 = vmatpush1.bf16.msra.mxu0 %v363
    %1198 = vmatprep.subr.bf16.mxu0 %v367
    %1199 = vmatpush1.bf16.msra.mxu0 %v366
    %1200 = vmatprep.subr.bf16.mxu0 %v370
    %1201 = vmatpush1.bf16.msra.mxu0 %v369
    %1202 = vmatprep.subr.bf16.mxu0 %v373
    %1203 = vmatpush1.bf16.msra.mxu0 %v372
    %1204 = vmatprep.subr.bf16.mxu0 0
    %1205 = vmatpush1.bf16.msra.mxu0 0
    %1206 = vmatprep.subr.bf16.mxu0 0
    %1207 = vmatpush1.bf16.msra.mxu0 0
    %1208 = vmatprep.subr.bf16.mxu0 0
    %1209 = vmatpush1.bf16.msra.mxu0 0
    %1210 = vmatprep.subr.bf16.mxu0 0
    %1211 = vmatpush1.bf16.msra.mxu0 0
    %1212 = vmatprep.subr.bf16.mxu0 0
    %1213 = vmatpush1.bf16.msra.mxu0 0
    %1214 = vmatprep.subr.bf16.mxu0 0
    %1215 = vmatpush1.bf16.msra.mxu0 0
    %1216 = vmatprep.subr.bf16.mxu0 0
    %1217 = vmatpush1.bf16.msra.mxu0 0
    %1218 = vmatprep.subr.bf16.mxu0 0
    %1219 = vmatpush1.bf16.msra.mxu0 0
    %1220 = vmatprep.mubr.bf16.mxu0 0
    %1221 = vmatmul.mubr.bf16.gmra.mrb[0].mxu0 %v1186
    %v1222 = vpop.f32.mrb[0].mxu0
    %v1223 = vadd.f32 0.0, %v1222
    %v1224 = vpop.f32.mrb[0].mxu0
    %v1225 = vadd.f32 0.0, %v1224
    %v1226 = vpop.f32.mrb[0].mxu0
    %v1227 = vpop.f32.mrb[0].mxu0
    %1228 = vdwg.mxu0
    %1229 = vmatprep.subr.bf16.mxu0 0
    %1230 = vmatpush1.bf16.msra.mxu0 %v353
    %1231 = vmatprep.subr.bf16.mxu0 0
    %1232 = vmatpush1.bf16.msra.mxu0 %v356
    %1233 = vmatprep.subr.bf16.mxu0 0
    %1234 = vmatpush1.bf16.msra.mxu0 %v359
    %1235 = vmatprep.subr.bf16.mxu0 0
    %1236 = vmatpush1.bf16.msra.mxu0 %v362
    %1237 = vmatprep.subr.bf16.mxu0 0
    %1238 = vmatpush1.bf16.msra.mxu0 %v365
    %1239 = vmatprep.subr.bf16.mxu0 0
    %1240 = vmatpush1.bf16.msra.mxu0 %v368
    %1241 = vmatprep.subr.bf16.mxu0 0
    %1242 = vmatpush1.bf16.msra.mxu0 %v371
    %1243 = vmatprep.subr.bf16.mxu0 0
    %1244 = vmatpush1.bf16.msra.mxu0 %v374
    %1245 = vmatprep.subr.bf16.mxu0 0
    %1246 = vmatpush1.bf16.msra.mxu0 0
    %1247 = vmatprep.subr.bf16.mxu0 0
    %1248 = vmatpush1.bf16.msra.mxu0 0
    %1249 = vmatprep.subr.bf16.mxu0 0
    %1250 = vmatpush1.bf16.msra.mxu0 0
    %1251 = vmatprep.subr.bf16.mxu0 0
    %1252 = vmatpush1.bf16.msra.mxu0 0
    %1253 = vmatprep.subr.bf16.mxu0 0
    %1254 = vmatpush1.bf16.msra.mxu0 0
    %1255 = vmatprep.subr.bf16.mxu0 0
    %1256 = vmatpush1.bf16.msra.mxu0 0
    %1257 = vmatprep.subr.bf16.mxu0 0
    %1258 = vmatpush1.bf16.msra.mxu0 0
    %1259 = vmatprep.subr.bf16.mxu0 0
    %1260 = vmatpush1.bf16.msra.mxu0 0
    %1261 = vmatprep.mubr.bf16.mxu0 0
    %1262 = vmatmul.mubr.bf16.gmra.mrb[0].mxu0 %v1186
    %v1263 = vpop.f32.mrb[0].mxu0
    %v1264 = vadd.f32 0.0, %v1263
    %v1265 = vpop.f32.mrb[0].mxu0
    %v1266 = vpop.f32.mrb[0].mxu0
    %v1267 = vpop.f32.mrb[0].mxu0
    %1268 = vdwg.mxu0
    %v1270 = vrot.slane %v1223, 2
    %v1272 = vadd.f32 %v153, %v1270
    %v1273 = vmul.f32 %v1272, 0.5
    %v1274 = vtanh.pop %v1273
    %v1275 = vmul.f32 %v1274, 0.5
    %v1276 = vadd.f32 %v1275, 0.5
    %v1278 = vrot.slane %v1225, 2
    %v1280 = vadd.f32 %v155, %v1278
    %v1281 = vmul.f32 %v1280, 0.5
    %v1282 = vtanh.pop %v1281
    %v1283 = vmul.f32 %v1282, 0.5
    %v1284 = vadd.f32 %v1283, 0.5
    %v1285 = vadd.f32 %v1264, %v269
    %v1287 = vrot.slane %v1285, 2
    %v1289 = vmul.f32 %v1276, %v1287
    %v1290 = vadd.f32 %v229, %v1289
    %v1291 = vtanh.pop %v1290
    %v1293 = vrot.slane %v1291, 2
    %v1295 = vsub.f32 %v1183, %v1293
    %v1297 = vrot.slane %v1295, 6
    %v1299 = vmul.f32 %v1284, %v1297
    %v1300 = vadd.f32 %v1291, %v1299
    %v1301 = vld [vmem:[%s5] sm:$0xff]
    %v1302 = vld [vmem:[%s5 + $0x8] sm:$0xff]
    %v1303 = vld [vmem:[%s5 + $0x10] sm:$0xff]
    %v1304 = vld [vmem:[%s5 + $0x18] sm:$0xff]
    %v1305 = vld [vmem:[%s5 + $0x20] sm:$0xff]
    %v1306 = vld [vmem:[%s5 + $0x28] sm:$0xff]
    %v1307 = vld [vmem:[%s5 + $0x30] sm:$0xff]
    %v1308 = vld [vmem:[%s5 + $0x38] sm:$0xff]
    %v1309 = vld [vmem:[%s5 + $0x40] sm:$0xff]
    %v1310 = vld [vmem:[%s5 + $0x48] sm:$0xff]
    %v1311 = vld [vmem:[%s5 + $0x50] sm:$0xff]
    %v1312 = vld [vmem:[%s5 + $0x58] sm:$0xff]
    %v1313 = vld [vmem:[%s5 + $0x60] sm:$0xff]
    %v1314 = vld [vmem:[%s5 + $0x68] sm:$0xff]
    %v1315 = vld [vmem:[%s5 + $0x70] sm:$0xff]
    %v1316 = vld [vmem:[%s5 + $0x78] sm:$0xff]
    %v1317 = vld [vmem:[%s6] sm:$0x1]
    %v1319 = vlaneseq
    %v1320 = vshrl.u32 %v1319, 7
    %v1321 = vsub.s32 0, %v1320
    %v1322 = vrot.slane %v1317, %v1321
    %v1325 = vrot.slane %v1300, 6
    %1327 = vmatprep.subr.mxu0 0.0
    %1328 = vmatpush1.msra.mxu0 %v1301
    %1329 = vmatprep.subr.mxu0 0.0
    %1330 = vmatpush1.msra.mxu0 %v1302
    %1331 = vmatprep.subr.mxu0 0.0
    %1332 = vmatpush1.msra.mxu0 %v1303
    %1333 = vmatprep.subr.mxu0 0.0
    %1334 = vmatpush1.msra.mxu0 %v1304
    %1335 = vmatprep.subr.mxu0 0.0
    %1336 = vmatpush1.msra.mxu0 %v1305
    %1337 = vmatprep.subr.mxu0 0.0
    %1338 = vmatpush1.msra.mxu0 %v1306
    %1339 = vmatprep.subr.mxu0 0.0
    %1340 = vmatpush1.msra.mxu0 %v1307
    %1341 = vmatprep.subr.mxu0 0.0
    %1342 = vmatpush1.msra.mxu0 %v1308
    %1343 = vmatprep.subr.mxu0 0.0
    %1344 = vmatpush1.msra.mxu0 %v1309
    %1345 = vmatprep.subr.mxu0 0.0
    %1346 = vmatpush1.msra.mxu0 %v1310
    %1347 = vmatprep.subr.mxu0 0.0
    %1348 = vmatpush1.msra.mxu0 %v1311
    %1349 = vmatprep.subr.mxu0 0.0
    %1350 = vmatpush1.msra.mxu0 %v1312
    %1351 = vmatprep.subr.mxu0 0.0
    %1352 = vmatpush1.msra.mxu0 %v1313
    %1353 = vmatprep.subr.mxu0 0.0
    %1354 = vmatpush1.msra.mxu0 %v1314
    %1355 = vmatprep.subr.mxu0 0.0
    %1356 = vmatpush1.msra.mxu0 %v1315
    %1357 = vmatprep.subr.mxu0 0.0
    %1358 = vmatpush1.msra.mxu0 %v1316
    %1359 = vmatprep.subr.mxu0 0.0
    %1360 = vmatpush1.msra.mxu0 0.0
    %1361 = vmatprep.subr.mxu0 0.0
    %1362 = vmatpush1.msra.mxu0 0.0
    %1363 = vmatprep.subr.mxu0 0.0
    %1364 = vmatpush1.msra.mxu0 0.0
    %1365 = vmatprep.subr.mxu0 0.0
    %1366 = vmatpush1.msra.mxu0 0.0
    %1367 = vmatprep.subr.mxu0 0.0
    %1368 = vmatpush1.msra.mxu0 0.0
    %1369 = vmatprep.subr.mxu0 0.0
    %1370 = vmatpush1.msra.mxu0 0.0
    %1371 = vmatprep.subr.mxu0 0.0
    %1372 = vmatpush1.msra.mxu0 0.0
    %1373 = vmatprep.subr.mxu0 0.0
    %1374 = vmatpush1.msra.mxu0 0.0
    %1375 = vmatprep.subr.mxu0 0.0
    %1376 = vmatpush1.msra.mxu0 0.0
    %1377 = vmatprep.subr.mxu0 0.0
    %1378 = vmatpush1.msra.mxu0 0.0
    %1379 = vmatprep.subr.mxu0 0.0
    %1380 = vmatpush1.msra.mxu0 0.0
    %1381 = vmatprep.subr.mxu0 0.0
    %1382 = vmatpush1.msra.mxu0 0.0
    %1383 = vmatprep.subr.mxu0 0.0
    %1384 = vmatpush1.msra.mxu0 0.0
    %1385 = vmatprep.subr.mxu0 0.0
    %1386 = vmatpush1.msra.mxu0 0.0
    %1387 = vmatprep.subr.mxu0 0.0
    %1388 = vmatpush1.msra.mxu0 0.0
    %1389 = vmatprep.subr.mxu0 0.0
    %1390 = vmatpush1.msra.mxu0 0.0
    %1391 = vmatprep.mubr.f32.mxu0 0.0
    %1392 = vmatmul.mubr.f32.gmra.mrb[0].mxu0 %v1325
    %v1393 = vpop.f32.mrb[0].mxu0
    %v1394 = vadd.f32 %v1322, %v1393
    %v1395 = vpop.f32.mrb[0].mxu0
    %1396 = vdwg.mxu0
    %vm1397 = vcmask 17408
    %1398 = vst.msk [vmem:[#allocation5] sm:$0x3] %vm1397, %v1394
    // Predicated region
    $region34: #{create_forward.1} parent=1 // pred_check
      _
    $region35: #{create_forward.1} parent=1 // pred_check_branch
      %1400 = sbr.rel (0) target = $region37
    $region36: #{create_forward.1} parent=1 // pred_region
      %s1402 = ssub.s32 32, 32
      %1403 = vsyncadd [#allocation4], %s1402
      %s1405 = sshll.u32 [#allocation5], 4
      %s1406 = int_to_ptr.vmem [resolvable:$true] %s1405
      %1408 = dma.vmem_to_hbm [thread:$0]  %s1406, 32, %s7, [#allocation4]
    $region37: #{create_forward.1} parent=1 // pred_fallthru
      _
    // Predicated region
    $region38: #{create_forward.1} parent=1 // pred_check
      _
    $region39: #{create_forward.1} parent=1 // pred_check_branch
      %1410 = sbr.rel (0) target = $region41
    $region40: #{create_forward.1} parent=1 // pred_region
      %1411 = dma.done [#allocation4], 32
    $region41: #{create_forward.1} parent=1 // pred_fallthru
      _
    %1412 = vsyncpa [#allocation3], 1
    %1413 = vsyncpa [#allocation4], 1

</llo_original>
